<compile_context>
chip_gen: v6e
topology: v6e:2x2x1
jax: 0.10.0
libtpu: 0.0.40
codegen_flags: <defaults>
</compile_context>

<pallas_src>
import functools

import jax
import jax.numpy as jnp
from jax import lax
from jax.experimental import pallas as pl
from jax.experimental.pallas import tpu as pltpu

NUM_CLASSES = 10          # the module hard-codes `for i in range(10)`
NUM_CLASSES_PAD = 16      # pad the class axis to a clean sublane multiple


def _round_up(x, m):
    return (x + m - 1) // m * m


@functools.lru_cache(maxsize=1)
def _vmem_limit_bytes():
    # Generation-aware VMEM budget: ~3/4 of physical capacity
    # (v5e/v6e 128 MiB -> 96 MiB, v7x 64 MiB -> 48 MiB); fall back to the
    # v7x-safe value if the query is unavailable.
    try:
        cap = int(pltpu.get_tpu_info().vmem_capacity_bytes)
    except Exception:
        cap = 64 * 1024 * 1024
    return max(32 * 1024 * 1024, (cap * 3) // 4)


def _mosaic_params(dim_sem):
    return pltpu.CompilerParams(dimension_semantics=dim_sem,
                                vmem_limit_bytes=_vmem_limit_bytes())


def _conv_tile(hwp, max_d, c_int):
    """Pixel tile (multiple of 128) for the fused conv and the padded pixel count."""
    # keep the f32 accumulator [C_int, tm] at ~256 KiB to limit vreg spill,
    # but use tiles >= 512 where possible to amortize per-grid-step overhead.
    cap = max(512, min(2048, ((64 * 1024) // max(c_int, 1)) // 128 * 128))
    t = min(cap, _round_up(hwp, 128))
    t = max(t, _round_up(max_d, 128))   # every tap slice must fit in 2 tiles
    return t, _round_up(hwp, t)


def _divisor_tile(npad, cap=1024):
    """Largest multiple of 128 that divides npad and is <= cap."""
    n128 = npad // 128
    for g in range(min(cap // 128, n128), 0, -1):
        if n128 % g == 0:
            return 128 * g
    return 128


# ---------------------------------------------------------------------------
# Fused conv1 (+bias) + per-class masked channel sums.
#   * pixels lane-dense on the padded-image grid (stride-1 "same-grid" conv,
#     cropped/subsampled afterwards)
#   * im2col replaced by static lane slices of a [Cin, 2*tm] in-VMEM window
#   * class sums accumulated in a resident [C_int, 16] f32 output block
# ---------------------------------------------------------------------------
def _pallas_conv_sums(xp_flat, w_taps, bias_col, mask_row, d_list, tm, npad):
    """xp_flat  [B, Cin, npad + tm]  bf16   zero-padded flattened padded image
       w_taps   [K*K, C_int, Cin]    bf16
       bias_col [C_int, 1]           f32
       mask_row [B, 1, npad]         int32  (-1 at non-output positions)
       returns  inter [B, C_int, npad] bf16, sums [B, C_int, 16] f32
    """
    B, Cin, _ = xp_flat.shape
    KK, C_int, _ = w_taps.shape
    nt = npad // tm

    def kernel(x0_ref, x1_ref, w_ref, b_ref, m_ref, inter_ref, sums_ref):
        @pl.when(pl.program_id(1) == 0)
        def _():
            sums_ref[...] = jnp.zeros_like(sums_ref)

        # current pixel tile + the next one: every (kh, kw) tap is a static
        # lane slice of this window (no im2col materialized in HBM).
        xcat = jnp.concatenate([x0_ref[0], x1_ref[0]], axis=1)   # [Cin, 2*tm]
        acc = jnp.zeros((C_int, tm), jnp.float32)
        for j in range(KK):
            d = d_list[j]
            acc = acc + jnp.dot(w_ref[j], xcat[:, d:d + tm],
                                preferred_element_type=jnp.float32)
        acc = acc + b_ref[...]
        inter_bf = acc.astype(jnp.bfloat16)
        inter_ref[0] = inter_bf

        # fused per-class channel sums: classes on sublanes, pixels on lanes.
        cls = lax.broadcasted_iota(jnp.int32, (NUM_CLASSES_PAD, tm), 0)
        onehot = (m_ref[0] == cls).astype(jnp.bfloat16)           # [16, tm]
        sums_ref[0] += lax.dot_general(
            inter_bf, onehot, (((1,), (1,)), ((), ())),
            preferred_element_type=jnp.float32)

    return pl.pallas_call(
        kernel,
        out_shape=(jax.ShapeDtypeStruct((B, C_int, npad), jnp.bfloat16),
                   jax.ShapeDtypeStruct((B, C_int, NUM_CLASSES_PAD),
                                        jnp.float32)),
        grid_spec=pltpu.PrefetchScalarGridSpec(
            num_scalar_prefetch=0,
            grid=(B, nt),
            in_specs=[
                pl.BlockSpec((1, Cin, tm), lambda b, t: (b, 0, t)),
                pl.BlockSpec((1, Cin, tm), lambda b, t: (b, 0, t + 1)),
                pl.BlockSpec((KK, C_int, Cin), lambda b, t: (0, 0, 0)),
                pl.BlockSpec((C_int, 1), lambda b, t: (0, 0)),
                pl.BlockSpec((1, 1, tm), lambda b, t: (b, 0, t)),
            ],
            out_specs=(
                pl.BlockSpec((1, C_int, tm), lambda b, t: (b, 0, t)),
                pl.BlockSpec((1, C_int, NUM_CLASSES_PAD),
                             lambda b, t: (b, 0, 0)),
            ),
        ),
        compiler_params=_mosaic_params(("parallel", "arbitrary")),
    )(xp_flat, xp_flat, w_taps, bias_col, mask_row)


# ---------------------------------------------------------------------------
# Select stage: 10 small gather matmuls with immediate masked accumulate.
# ---------------------------------------------------------------------------
def _pallas_select(mask_row, inter_t, sel, tm, c_out):
    # mask_row [B,1,npad] int32, inter_t [B,C_int,npad] bf16,
    # sel [B, 10*C_out, C_int] one-hot bf16  ->  y [B, C_out, npad] f32
    B, C_int, npad = inter_t.shape

    def kernel(m_ref, x_ref, s_ref, y_ref):
        x = x_ref[0]                                  # [C_int, tm] bf16
        m = m_ref[0]                                  # [1, tm] int32
        sel_all = s_ref[0]                            # [10*C_out, C_int] bf16
        acc = jnp.zeros((c_out, tm), jnp.float32)
        for i in range(NUM_CLASSES):
            # p_i[j, :] == inter[e[i, j], :] exactly (one-hot gather matmul)
            p_i = jnp.dot(sel_all[i * c_out:(i + 1) * c_out, :], x,
                          preferred_element_type=jnp.float32)
            acc = acc + (m == i).astype(jnp.float32) * p_i
        y_ref[0] = acc

    return pl.pallas_call(
        kernel,
        out_shape=jax.ShapeDtypeStruct((B, c_out, npad), jnp.float32),
        grid_spec=pltpu.PrefetchScalarGridSpec(
            num_scalar_prefetch=0,
            grid=(B, npad // tm),
            in_specs=[
                pl.BlockSpec((1, 1, tm), lambda b, t: (b, 0, t)),
                pl.BlockSpec((1, C_int, tm), lambda b, t: (b, 0, t)),
                pl.BlockSpec((1, NUM_CLASSES * c_out, C_int),
                             lambda b, t: (b, 0, 0)),
            ],
            out_specs=pl.BlockSpec((1, c_out, tm), lambda b, t: (b, 0, t)),
        ),
        compiler_params=_mosaic_params(("parallel", "parallel")),
    )(mask_row, inter_t, sel)


# ---------------------------------------------------------------------------
# JAX glue / public entry points
# ---------------------------------------------------------------------------
def rgfs_conv_parts(x, mask, weight, bias, output_channel,
                    kernel_size=3, padding=1, stride=1):
    """Returns (y [B,C_out,H',W'], inter [B,C_int,H'*W'],
                sums [B,10,C_int], e [B,10,C_out])."""
    # TODO(synk): dilation != 1 is not supported.
    B, Cin, H, W = x.shape
    C_int = weight.shape[0]
    K = kernel_size
    H_out = (H + 2 * padding - K) // stride + 1
    W_out = (W + 2 * padding - K) // stride + 1
    Hp, Wp = H + 2 * padding, W + 2 * padding
    HWp = Hp * Wp
    max_d = (K - 1) * Wp + (K - 1)
    tm_conv, npad = _conv_tile(HWp, max_d, C_int)

    # --- padded input image, flattened lane-dense, bf16, plus one extra zero
    #     tile so the "next tile" view of the conv kernel is always in range ---
    xp = jnp.pad(x.astype(jnp.bfloat16),
                 ((0, 0), (0, 0), (padding, padding), (padding, padding)))
    xp_flat = jnp.pad(xp.reshape(B, Cin, HWp),
                      ((0, 0), (0, 0), (0, npad + tm_conv - HWp)))

    # --- F.interpolate(mask, 0.25, 'nearest') == stride-4 pick; place class
    #     ids at the conv-output positions of the padded grid, -1 elsewhere ---
    mask_ds = jnp.round(mask[:, ::4, ::4][:, :H_out, :W_out]).astype(jnp.int32)
    mgrid = jnp.full((B, Hp, Wp), -1, jnp.int32)
    mgrid = mgrid.at[:, 0:stride * H_out:stride,
                     0:stride * W_out:stride].set(mask_ds)
    mask_pad = jnp.pad(mgrid.reshape(B, HWp), ((0, 0), (0, npad - HWp)),
                       constant_values=-1)
    mask_row = mask_pad[:, None, :]

    # --- fused conv (+bias) + per-class channel sums (Pallas) ---
    w_taps = jnp.transpose(weight, (2, 3, 0, 1)).reshape(
        K * K, C_int, Cin).astype(jnp.bfloat16)
    d_list = tuple(kh * Wp + kw for kh in range(K) for kw in range(K))
    bias_col = bias.astype(jnp.float32).reshape(C_int, 1)
    inter_t, sums_ct = _pallas_conv_sums(xp_flat, w_taps, bias_col, mask_row,
                                         d_list, tm_conv, npad)

    # --- channel selection (JAX glue) ---
    # TODO(synk): sort/top-k has no clean Pallas TPU equivalent; done in JAX.
    sums = jnp.transpose(sums_ct, (0, 2, 1))[:, :NUM_CLASSES, :]  # [B,10,C_int]
    order = jnp.argsort(-sums, axis=-1)
    e = jnp.sort(order[:, :, :output_channel], axis=-1)           # [B,10,C_out]
    e_flat = e.reshape(B, NUM_CLASSES * output_channel)
    sel = (e_flat[:, :, None] ==
           jnp.arange(C_int)[None, None, :]).astype(jnp.bfloat16)

    # --- masked per-class gather / select (Pallas) ---
    tm_sel = _divisor_tile(npad, cap=1024)
    y_t = _pallas_select(mask_row, inter_t, sel, tm_sel, output_channel)

    # --- crop the padded grid back to the conv output grid ---
    def crop(a):
        a = a[:, :, :HWp].reshape(B, -1, Hp, Wp)
        return a[:, :, 0:stride * H_out:stride, 0:stride * W_out:stride]

    y = crop(y_t)                                                 # f32
    inter = crop(inter_t.astype(jnp.float32)).reshape(B, C_int, H_out * W_out)
    return y, inter, sums, e


def rgfs_conv_forward(x, mask, weight, bias, output_channel,
                      kernel_size=3, padding=1, stride=1):
    return rgfs_conv_parts(x, mask, weight, bias, output_channel,
                           kernel_size, padding, stride)[0]


# ---------------------------------------------------------------------------
# Pure-JAX references (for sanity checking the kernels)
# ---------------------------------------------------------------------------
def _reference_class_sums(inter_bhwc, mask_int):
    onehot = (mask_int[:, :, None] ==
              jnp.arange(NUM_CLASSES)[None, None, :]).astype(jnp.float32)
    return jnp.einsum("bpi,bpc->bic", onehot, inter_bhwc)


def _reference_gather(inter_bhwc, mask_int, e):
    B, HW, _ = inter_bhwc.shape
    C_out = e.shape[-1]
    y = jnp.zeros((B, HW, C_out), jnp.float32)
    for i in range(NUM_CLASSES):
        idx = (mask_int == i).astype(jnp.float32)[..., None]
        temp = inter_bhwc * idx
        y = y + jnp.take_along_axis(temp, e[:, i][:, None, :], axis=2)
    return y


if __name__ == "__main__":
    B, Cin, H, W = 2, 4, 16, 16
    output_channel, ratio = 8, 2.0
    C_int = int(output_channel * ratio)      # 16 intermediate channels
    K, padding, stride = 3, 1, 1

    key = jax.random.PRNGKey(0)
    k1, k2, k3, k4 = jax.random.split(key, 4)
    weight = jax.random.normal(k1, (C_int, Cin, K, K), jnp.float32) * 0.1
    bias = jax.random.normal(k2, (C_int,), jnp.float32) * 0.05
    x = jax.random.normal(k3, (B, Cin, H, W), jnp.float32)
    # mask at 4x the conv-output resolution, integer class ids 0..9 as floats
    mask = jax.random.randint(k4, (B, 4 * H, 4 * W), 0, NUM_CLASSES
                              ).astype(jnp.float32)

    y, inter, sums, e = rgfs_conv_parts(x, mask, weight, bias, output_channel,
                                        kernel_size=K, padding=padding,
                                        stride=stride)
    y = jax.block_until_ready(y)

    H_out = (H + 2 * padding - K) // stride + 1
    W_out = (W + 2 * padding - K) // stride + 1

    # --- check 1: conv vs f32 lax.conv (bf16 MXU operands + bf16 storage) ---
    inter_ref = lax.conv_general_dilated(
        x, weight, window_strides=(stride, stride),
        padding=[(padding, padding), (padding, padding)],
        dimension_numbers=("NCHW", "OIHW", "NCHW"),
    ) + bias[None, :, None, None]
    inter_nchw = inter.reshape(B, C_int, H_out, W_out)
    assert jnp.allclose(inter_nchw, inter_ref, atol=5e-2, rtol=5e-2), "conv"

    # --- check 2: per-class masked sums vs pure-JAX sums of kernel's inter ---
    mask_int = jnp.round(mask[:, ::4, ::4][:, :H_out, :W_out]).astype(jnp.int32)
    mask_flat = mask_int.reshape(B, H_out * W_out)
    inter_bhwc = jnp.transpose(inter, (0, 2, 1))              # [B, HW, C_int]
    sums_ref = _reference_class_sums(inter_bhwc, mask_flat)
    assert jnp.allclose(sums, sums_ref, atol=1e-2, rtol=1e-2), "sums"

    # --- check 3: masked gather/select vs pure-JAX (same inter and e) ---
    y_ref = _reference_gather(inter_bhwc, mask_flat, e)
    y_ref = y_ref.reshape(B, H_out, W_out, output_channel).transpose(0, 3, 1, 2)
    assert jnp.allclose(y, y_ref, atol=1e-2, rtol=1e-2), "select"

    print("KERNEL_OK")
</pallas_src>

<mosaic_0001>
module attributes {stable_mosaic.version = 11 : i64} {
  func.func @kernel(%arg0: i32, %arg1: i32, %arg2: memref<1x4x384xbf16, #tpu.memory_space<vmem>>, %arg3: memref<1x4x384xbf16, #tpu.memory_space<vmem>>, %arg4: memref<9x16x4xbf16, #tpu.memory_space<vmem>>, %arg5: memref<16x1xf32, #tpu.memory_space<vmem>>, %arg6: memref<1x1x384xi32, #tpu.memory_space<vmem>>, %arg7: memref<1x16x384xbf16, #tpu.memory_space<vmem>>, %arg8: memref<1x16x16xf32, #tpu.memory_space<vmem>>) attributes {dimension_semantics = [#tpu.dimension_semantics<parallel>, #tpu.dimension_semantics<arbitrary>], iteration_bounds = array<i64: 2, 1>, scalar_prefetch = 0 : i64, scratch_operands = 0 : i64, tpu.core_type = #tpu.core_type<tc>, window_params = [{transform_indices = @transform_0, window_bounds = array<i64: 1, 4, 384>}, {transform_indices = @transform_1, window_bounds = array<i64: 1, 4, 384>}, {pipeline_mode = #tpu.pipeline_mode<synchronous>, transform_indices = @transform_2, window_bounds = array<i64: 9, 16, 4>}, {pipeline_mode = #tpu.pipeline_mode<synchronous>, transform_indices = @transform_3, window_bounds = array<i64: 16, 1>}, {transform_indices = @transform_4, window_bounds = array<i64: 1, 1, 384>}, {transform_indices = @transform_5, window_bounds = array<i64: 1, 16, 384>}, {transform_indices = @transform_6, window_bounds = array<i64: 1, 16, 16>}]} {
    %c0_i32 = arith.constant 0 : i32
    %0 = arith.cmpi eq, %arg1, %c0_i32 : i32
    %1 = arith.extui %0 : i1 to i32
    %c0_i32_0 = arith.constant 0 : i32
    %2 = arith.cmpi ne, %1, %c0_i32_0 : i32
    scf.if %2 {
      %cst_49 = arith.constant 0.000000e+00 : f32
      %76 = vector.broadcast %cst_49 : f32 to vector<1x16x16xf32>
      %c0_50 = arith.constant 0 : index
      %c0_51 = arith.constant 0 : index
      %c0_52 = arith.constant 0 : index
      %77 = vector.load %arg8[%c0_50, %c0_51, %c0_52] : memref<1x16x16xf32, #tpu.memory_space<vmem>>, vector<1x16x16xf32>
      tpu.vector_store %arg8[%c0_50, %c0_51, %c0_52], %76 {strides = array<i32>} : memref<1x16x16xf32, #tpu.memory_space<vmem>>, vector<1x16x16xf32>,
    } else {
    }
    %c0 = arith.constant 0 : index
    %c0_1 = arith.constant 0 : index
    %c0_2 = arith.constant 0 : index
    %3 = vector.load %arg2[%c0, %c0_1, %c0_2] : memref<1x4x384xbf16, #tpu.memory_space<vmem>>, vector<1x4x384xbf16>
    %4 = vector.shape_cast %3 : vector<1x4x384xbf16> to vector<4x384xbf16>
    %c0_3 = arith.constant 0 : index
    %c0_4 = arith.constant 0 : index
    %c0_5 = arith.constant 0 : index
    %5 = vector.load %arg3[%c0_3, %c0_4, %c0_5] : memref<1x4x384xbf16, #tpu.memory_space<vmem>>, vector<1x4x384xbf16>
    %6 = vector.shape_cast %5 : vector<1x4x384xbf16> to vector<4x384xbf16>
    %7 = tpu.concatenate %4, %6 in 1 : vector<4x384xbf16>, vector<4x384xbf16> -> vector<4x768xbf16>
    %cst = arith.constant 0.000000e+00 : f32
    %8 = vector.broadcast %cst : f32 to vector<16x384xf32>
    %c0_6 = arith.constant 0 : index
    %c0_7 = arith.constant 0 : index
    %c0_8 = arith.constant 0 : index
    %9 = vector.load %arg4[%c0_6, %c0_7, %c0_8] : memref<9x16x4xbf16, #tpu.memory_space<vmem>>, vector<1x16x4xbf16>
    %10 = vector.shape_cast %9 : vector<1x16x4xbf16> to vector<16x4xbf16>
    %11 = vector.extract_strided_slice %7 {offsets = [0, 0], sizes = [4, 384], strides = [1, 1]} : vector<4x768xbf16> to vector<4x384xbf16>
    %cst_9 = arith.constant dense<0.000000e+00> : vector<16x384xf32>
    %12 = tpu.matmul %10, %11, %cst_9 {dimension_numbers = #tpu.dot_dimension_numbers<[1], [0], [0], [1], [0, 0, 1, 1], [], []>} : vector<16x4xbf16>, vector<4x384xbf16>, vector<16x384xf32> -> vector<16x384xf32>
    %13 = arith.addf %8, %12 : vector<16x384xf32>
    %c1 = arith.constant 1 : index
    %c0_10 = arith.constant 0 : index
    %c0_11 = arith.constant 0 : index
    %14 = vector.load %arg4[%c1, %c0_10, %c0_11] : memref<9x16x4xbf16, #tpu.memory_space<vmem>>, vector<1x16x4xbf16>
    %15 = vector.shape_cast %14 : vector<1x16x4xbf16> to vector<16x4xbf16>
    %16 = vector.extract_strided_slice %7 {offsets = [0, 1], sizes = [4, 384], strides = [1, 1]} : vector<4x768xbf16> to vector<4x384xbf16>
    %cst_12 = arith.constant dense<0.000000e+00> : vector<16x384xf32>
    %17 = tpu.matmul %15, %16, %cst_12 {dimension_numbers = #tpu.dot_dimension_numbers<[1], [0], [0], [1], [0, 0, 1, 1], [], []>} : vector<16x4xbf16>, vector<4x384xbf16>, vector<16x384xf32> -> vector<16x384xf32>
    %18 = arith.addf %13, %17 : vector<16x384xf32>
    %c2 = arith.constant 2 : index
    %c0_13 = arith.constant 0 : index
    %c0_14 = arith.constant 0 : index
    %19 = vector.load %arg4[%c2, %c0_13, %c0_14] : memref<9x16x4xbf16, #tpu.memory_space<vmem>>, vector<1x16x4xbf16>
    %20 = vector.shape_cast %19 : vector<1x16x4xbf16> to vector<16x4xbf16>
    %21 = vector.extract_strided_slice %7 {offsets = [0, 2], sizes = [4, 384], strides = [1, 1]} : vector<4x768xbf16> to vector<4x384xbf16>
    %cst_15 = arith.constant dense<0.000000e+00> : vector<16x384xf32>
    %22 = tpu.matmul %20, %21, %cst_15 {dimension_numbers = #tpu.dot_dimension_numbers<[1], [0], [0], [1], [0, 0, 1, 1], [], []>} : vector<16x4xbf16>, vector<4x384xbf16>, vector<16x384xf32> -> vector<16x384xf32>
    %23 = arith.addf %18, %22 : vector<16x384xf32>
    %c3 = arith.constant 3 : index
    %c0_16 = arith.constant 0 : index
    %c0_17 = arith.constant 0 : index
    %24 = vector.load %arg4[%c3, %c0_16, %c0_17] : memref<9x16x4xbf16, #tpu.memory_space<vmem>>, vector<1x16x4xbf16>
    %25 = vector.shape_cast %24 : vector<1x16x4xbf16> to vector<16x4xbf16>
    %26 = vector.extract_strided_slice %7 {offsets = [0, 18], sizes = [4, 384], strides = [1, 1]} : vector<4x768xbf16> to vector<4x384xbf16>
    %cst_18 = arith.constant dense<0.000000e+00> : vector<16x384xf32>
    %27 = tpu.matmul %25, %26, %cst_18 {dimension_numbers = #tpu.dot_dimension_numbers<[1], [0], [0], [1], [0, 0, 1, 1], [], []>} : vector<16x4xbf16>, vector<4x384xbf16>, vector<16x384xf32> -> vector<16x384xf32>
    %28 = arith.addf %23, %27 : vector<16x384xf32>
    %c4 = arith.constant 4 : index
    %c0_19 = arith.constant 0 : index
    %c0_20 = arith.constant 0 : index
    %29 = vector.load %arg4[%c4, %c0_19, %c0_20] : memref<9x16x4xbf16, #tpu.memory_space<vmem>>, vector<1x16x4xbf16>
    %30 = vector.shape_cast %29 : vector<1x16x4xbf16> to vector<16x4xbf16>
    %31 = vector.extract_strided_slice %7 {offsets = [0, 19], sizes = [4, 384], strides = [1, 1]} : vector<4x768xbf16> to vector<4x384xbf16>
    %cst_21 = arith.constant dense<0.000000e+00> : vector<16x384xf32>
    %32 = tpu.matmul %30, %31, %cst_21 {dimension_numbers = #tpu.dot_dimension_numbers<[1], [0], [0], [1], [0, 0, 1, 1], [], []>} : vector<16x4xbf16>, vector<4x384xbf16>, vector<16x384xf32> -> vector<16x384xf32>
    %33 = arith.addf %28, %32 : vector<16x384xf32>
    %c5 = arith.constant 5 : index
    %c0_22 = arith.constant 0 : index
    %c0_23 = arith.constant 0 : index
    %34 = vector.load %arg4[%c5, %c0_22, %c0_23] : memref<9x16x4xbf16, #tpu.memory_space<vmem>>, vector<1x16x4xbf16>
    %35 = vector.shape_cast %34 : vector<1x16x4xbf16> to vector<16x4xbf16>
    %36 = vector.extract_strided_slice %7 {offsets = [0, 20], sizes = [4, 384], strides = [1, 1]} : vector<4x768xbf16> to vector<4x384xbf16>
    %cst_24 = arith.constant dense<0.000000e+00> : vector<16x384xf32>
    %37 = tpu.matmul %35, %36, %cst_24 {dimension_numbers = #tpu.dot_dimension_numbers<[1], [0], [0], [1], [0, 0, 1, 1], [], []>} : vector<16x4xbf16>, vector<4x384xbf16>, vector<16x384xf32> -> vector<16x384xf32>
    %38 = arith.addf %33, %37 : vector<16x384xf32>
    %c6 = arith.constant 6 : index
    %c0_25 = arith.constant 0 : index
    %c0_26 = arith.constant 0 : index
    %39 = vector.load %arg4[%c6, %c0_25, %c0_26] : memref<9x16x4xbf16, #tpu.memory_space<vmem>>, vector<1x16x4xbf16>
    %40 = vector.shape_cast %39 : vector<1x16x4xbf16> to vector<16x4xbf16>
    %41 = vector.extract_strided_slice %7 {offsets = [0, 36], sizes = [4, 384], strides = [1, 1]} : vector<4x768xbf16> to vector<4x384xbf16>
    %cst_27 = arith.constant dense<0.000000e+00> : vector<16x384xf32>
    %42 = tpu.matmul %40, %41, %cst_27 {dimension_numbers = #tpu.dot_dimension_numbers<[1], [0], [0], [1], [0, 0, 1, 1], [], []>} : vector<16x4xbf16>, vector<4x384xbf16>, vector<16x384xf32> -> vector<16x384xf32>
    %43 = arith.addf %38, %42 : vector<16x384xf32>
    %c7 = arith.constant 7 : index
    %c0_28 = arith.constant 0 : index
    %c0_29 = arith.constant 0 : index
    %44 = vector.load %arg4[%c7, %c0_28, %c0_29] : memref<9x16x4xbf16, #tpu.memory_space<vmem>>, vector<1x16x4xbf16>
    %45 = vector.shape_cast %44 : vector<1x16x4xbf16> to vector<16x4xbf16>
    %46 = vector.extract_strided_slice %7 {offsets = [0, 37], sizes = [4, 384], strides = [1, 1]} : vector<4x768xbf16> to vector<4x384xbf16>
    %cst_30 = arith.constant dense<0.000000e+00> : vector<16x384xf32>
    %47 = tpu.matmul %45, %46, %cst_30 {dimension_numbers = #tpu.dot_dimension_numbers<[1], [0], [0], [1], [0, 0, 1, 1], [], []>} : vector<16x4xbf16>, vector<4x384xbf16>, vector<16x384xf32> -> vector<16x384xf32>
    %48 = arith.addf %43, %47 : vector<16x384xf32>
    %c8 = arith.constant 8 : index
    %c0_31 = arith.constant 0 : index
    %c0_32 = arith.constant 0 : index
    %49 = vector.load %arg4[%c8, %c0_31, %c0_32] : memref<9x16x4xbf16, #tpu.memory_space<vmem>>, vector<1x16x4xbf16>
    %50 = vector.shape_cast %49 : vector<1x16x4xbf16> to vector<16x4xbf16>
    %51 = vector.extract_strided_slice %7 {offsets = [0, 38], sizes = [4, 384], strides = [1, 1]} : vector<4x768xbf16> to vector<4x384xbf16>
    %cst_33 = arith.constant dense<0.000000e+00> : vector<16x384xf32>
    %52 = tpu.matmul %50, %51, %cst_33 {dimension_numbers = #tpu.dot_dimension_numbers<[1], [0], [0], [1], [0, 0, 1, 1], [], []>} : vector<16x4xbf16>, vector<4x384xbf16>, vector<16x384xf32> -> vector<16x384xf32>
    %53 = arith.addf %48, %52 : vector<16x384xf32>
    %c0_34 = arith.constant 0 : index
    %c0_35 = arith.constant 0 : index
    %54 = vector.load %arg5[%c0_34, %c0_35] : memref<16x1xf32, #tpu.memory_space<vmem>>, vector<16x1xf32>
    %55 = vector.broadcast %54 : vector<16x1xf32> to vector<16x384xf32>
    %56 = arith.addf %53, %55 : vector<16x384xf32>
    %57 = arith.truncf %56 : vector<16x384xf32> to vector<16x384xbf16>
    %c0_36 = arith.constant 0 : index
    %c0_37 = arith.constant 0 : index
    %c0_38 = arith.constant 0 : index
    %58 = vector.load %arg7[%c0_36, %c0_37, %c0_38] : memref<1x16x384xbf16, #tpu.memory_space<vmem>>, vector<1x16x384xbf16>
    %59 = vector.shape_cast %58 : vector<1x16x384xbf16> to vector<16x384xbf16>
    %60 = vector.shape_cast %57 : vector<16x384xbf16> to vector<1x16x384xbf16>
    tpu.vector_store %arg7[%c0_36, %c0_37, %c0_38], %60 {strides = array<i32>} : memref<1x16x384xbf16, #tpu.memory_space<vmem>>, vector<1x16x384xbf16>,
    %61 = tpu.iota {dimensions = array<i32: 0>} : vector<16x384xi32>
    %c0_39 = arith.constant 0 : index
    %c0_40 = arith.constant 0 : index
    %c0_41 = arith.constant 0 : index
    %62 = vector.load %arg6[%c0_39, %c0_40, %c0_41] : memref<1x1x384xi32, #tpu.memory_space<vmem>>, vector<1x1x384xi32>
    %63 = vector.shape_cast %62 : vector<1x1x384xi32> to vector<1x384xi32>
    %64 = vector.broadcast %63 : vector<1x384xi32> to vector<16x384xi32>
    %65 = arith.cmpi eq, %64, %61 : vector<16x384xi32>
    %66 = arith.extui %65 : vector<16x384xi1> to vector<16x384xi32>
    %67 = arith.sitofp %66 : vector<16x384xi32> to vector<16x384xf32>
    %68 = arith.truncf %67 : vector<16x384xf32> to vector<16x384xbf16>
    %c0_42 = arith.constant 0 : index
    %c0_43 = arith.constant 0 : index
    %c0_44 = arith.constant 0 : index
    %69 = vector.load %arg8[%c0_42, %c0_43, %c0_44] : memref<1x16x16xf32, #tpu.memory_space<vmem>>, vector<1x16x16xf32>
    %70 = vector.shape_cast %69 : vector<1x16x16xf32> to vector<16x16xf32>
    %cst_45 = arith.constant dense<0.000000e+00> : vector<16x16xf32>
    %71 = tpu.matmul %57, %68, %cst_45 {dimension_numbers = #tpu.dot_dimension_numbers<[1], [1], [0], [0], [0, 0, 1, 0], [], []>} : vector<16x384xbf16>, vector<16x384xbf16>, vector<16x16xf32> -> vector<16x16xf32>
    %72 = arith.addf %70, %71 : vector<16x16xf32>
    %c0_46 = arith.constant 0 : index
    %c0_47 = arith.constant 0 : index
    %c0_48 = arith.constant 0 : index
    %73 = vector.load %arg8[%c0_46, %c0_47, %c0_48] : memref<1x16x16xf32, #tpu.memory_space<vmem>>, vector<1x16x16xf32>
    %74 = vector.shape_cast %73 : vector<1x16x16xf32> to vector<16x16xf32>
    %75 = vector.shape_cast %72 : vector<16x16xf32> to vector<1x16x16xf32>
    tpu.vector_store %arg8[%c0_46, %c0_47, %c0_48], %75 {strides = array<i32>} : memref<1x16x16xf32, #tpu.memory_space<vmem>>, vector<1x16x16xf32>,
    return
  }
  func.func @transform_0(%arg0: i32, %arg1: i32) -> (i32, i32, i32) {
    %c0_i32 = arith.constant 0 : i32
    %c0_i32_0 = arith.constant 0 : i32
    return %arg0, %c0_i32, %arg1 : i32, i32, i32
  }
  func.func @transform_1(%arg0: i32, %arg1: i32) -> (i32, i32, i32) {
    %c1_i32 = arith.constant 1 : i32
    %0 = arith.addi %arg1, %c1_i32 : i32
    %c0_i32 = arith.constant 0 : i32
    %c0_i32_0 = arith.constant 0 : i32
    return %arg0, %c0_i32, %0 : i32, i32, i32
  }
  func.func @transform_2(%arg0: i32, %arg1: i32) -> (i32, i32, i32) {
    %c0_i32 = arith.constant 0 : i32
    %c0_i32_0 = arith.constant 0 : i32
    %c0_i32_1 = arith.constant 0 : i32
    %c0_i32_2 = arith.constant 0 : i32
    return %c0_i32, %c0_i32_0, %c0_i32_1 : i32, i32, i32
  }
  func.func @transform_3(%arg0: i32, %arg1: i32) -> (i32, i32) {
    %c0_i32 = arith.constant 0 : i32
    %c0_i32_0 = arith.constant 0 : i32
    %c0_i32_1 = arith.constant 0 : i32
    return %c0_i32, %c0_i32_0 : i32, i32
  }
  func.func @transform_4(%arg0: i32, %arg1: i32) -> (i32, i32, i32) {
    %c0_i32 = arith.constant 0 : i32
    %c0_i32_0 = arith.constant 0 : i32
    return %arg0, %c0_i32, %arg1 : i32, i32, i32
  }
  func.func @transform_5(%arg0: i32, %arg1: i32) -> (i32, i32, i32) {
    %c0_i32 = arith.constant 0 : i32
    %c0_i32_0 = arith.constant 0 : i32
    return %arg0, %c0_i32, %arg1 : i32, i32, i32
  }
  func.func @transform_6(%arg0: i32, %arg1: i32) -> (i32, i32, i32) {
    %c0_i32 = arith.constant 0 : i32
    %c0_i32_0 = arith.constant 0 : i32
    %c0_i32_1 = arith.constant 0 : i32
    return %arg0, %c0_i32, %c0_i32_0 : i32, i32, i32
  }
}

</mosaic_0001>

<llo_original>
// kernel: tpu_custom_call.1
$region0: #{tpu_custom_call.1}
  #allocation0 [shape = 'u32[]', space=smem, size = 0x4, offset = 0x4, fixed_abs, tag = 'smem constant byte address 0x4 - core index']
  #allocation1 [shape = 'u32[144,128]{1,0:T(1,128)}', space=vmem, size = 0x12000, scoped, tag = 'internal scratch']
  %s0 = inlined_call_operand.vmem [shape: bf16[2,4,768], index: 0, kind: input, shape index: {}]
  %s1 = inlined_call_operand.vmem [shape: bf16[2,4,768], index: 1, kind: input, shape index: {}]
  %s2 = inlined_call_operand.vmem [shape: bf16[9,16,4], index: 2, kind: input, shape index: {}]
  %s3 = inlined_call_operand.vmem [shape: f32[16,1], index: 3, kind: input, shape index: {}]
  %s4 = inlined_call_operand.vmem [shape: s32[2,1,384], index: 4, kind: input, shape index: {}]
  %s5 = inlined_call_operand.hbm [shape: bf16[2,16,384], index: 5, kind: output, shape index: {0}]
  %s6 = inlined_call_operand.hbm [shape: f32[2,16,16], index: 6, kind: output, shape index: {1}]
  %7 = xla_tuple %s5, %s6
  %s8 = sld [smem:[#allocation0]]
  $region65: #{tpu_custom_call.1} parent=0
    _
  %s10 = ssub.s32 1, %s8
  %s11 = scalar_select 0, %s10, %s8
  $region1: #{tpu_custom_call.1} parent=0
    #allocation2 [shape = 'u8[24576]{0}', space=vmem, size = 0x6000, scoped, tag = 'output window, operand 0']
    #allocation3 [shape = 's32[2]{0}', space=sflag, size = 0x8, scoped, tag = 'scoped memory for tpu_custom_call.1']
    #allocation4 [shape = 'u8[16384]{0}', space=vmem, size = 0x4000, scoped, tag = 'output window, operand 1']
    #allocation5 [shape = 's32[2]{0}', space=sflag, size = 0x8, scoped, tag = 'scoped memory for tpu_custom_call.1']
    %12 = vsyncpa [#allocation3], 0
    %s13 = scalar_lea.sflag [#allocation3], 1
    %14 = vsyncpa %s13, 0
    %15 = vsyncpa [#allocation5], 0
    %s16 = scalar_lea.sflag [#allocation5], 1
    %17 = vsyncpa %s16, 0
    loop: start=0, step=1, limit=4
    $region2: #{tpu_custom_call.1} parent=1 // loop_pre_header
      _
    $region3: #{tpu_custom_call.1} parent=1 // loop_header
      %s19 = sphi 0, %s23
      %p20 = scmp.ge.s32.totalorder %s19, 4
      %s26 = sphi 0, %s38
      %s27 = sphi 0, %s34
      %s28 = sphi 0, %s26
      %s29 = sphi 0, %s27
      %s30 = sphi 0, %s28
      %s31 = sphi 0, %s29
      %s43 = sphi 0, %s45
      %s46 = sphi 0, %s43
      %s47 = sphi 0, %s46
      %s63 = sphi 0, %s47
      %s73 = sphi 0, %s75
      %s76 = sphi 0, %s73
      %s77 = sphi 0, %s76
      %s93 = sphi 0, %s77
      %s97 = sphi 0, %s97
      %s99 = sphi 0, %s97
      %s100 = sphi 0, %s99
      %s114 = sphi 0, %s100
      %s118 = sphi 0, %s118
      %s120 = sphi 0, %s118
      %s121 = sphi 0, %s120
      %s135 = sphi 0, %s121
      %s143 = sphi 0, %s145
      %s146 = sphi 0, %s143
      %s147 = sphi 0, %s146
      %s163 = sphi 0, %s147
      %s171 = sphi 0, %s173
      %s174 = sphi 0, %s171
      %s175 = sphi 0, %s174
      %s191 = sphi 0, %s175
      %s197 = sphi 0, %s199
      %s200 = sphi 0, %s197
      %s201 = sphi 0, %s200
      %s217 = sphi 0, %s201
    $region4: #{tpu_custom_call.1} parent=1 // loop_header_branch
      %22 = sbr.rel (%p20) target = $region8
    $region5: #{tpu_custom_call.1} parent=1 // loop_body
      %s24 = ssub.s32 %s19, 1
      %s25 = ssub.s32 %s19, 2
      %s32 = sadd.s32 1, %s27
      %p33 = scmp.ge.s32.totalorder %s32, 1
      %s34 = scalar_select %p33, 0, %s32
      %s35 = sadd.s32 1, %s26
      %s36 = scalar_select %p33, %s35, %s26
      %p37 = scmp.ge.s32.totalorder %s36, 2
      %s38 = scalar_select %p37, 0, %s36
      %s39 = ssub.s32 %s26, %s38
      %s40 = ssub.s32 %s27, %s34
      %s41 = sor.u32 %s39, %s40
      %p42 = scmp.eq.s32.totalorder %s41, 0
      %s44 = sadd.s32 %s43, 1
      %s45 = scalar_select %p42, %s43, %s44
      %p48 = pneg %p42
      %p49 = scmp.eq.s32.totalorder %s19, 1
      %p50 = por %p48, %p49
      %p51 = scmp.ne.s32.totalorder %s43, %s46
      %p52 = scmp.eq.s32.totalorder %s19, 0
      %p53 = por %p51, %p52
      %p54 = scmp.ne.s32.totalorder %s43, %s46
      %p55 = scmp.eq.s32.totalorder %s24, 1
      %p56 = por %p54, %p55
      %p57 = scmp.ne.s32.totalorder %s46, %s47
      %p58 = scmp.eq.s32.totalorder %s24, 0
      %p59 = por %p57, %p58
      %p60 = scmp.ne.s32.totalorder %s46, %s47
      %p61 = scmp.eq.s32.totalorder %s25, 1
      %p62 = por %p60, %p61
      %p64 = scmp.ne.s32.totalorder %s47, %s63
      %p65 = scmp.eq.s32.totalorder %s25, 0
      %p66 = por %p64, %p65
      %s67 = sadd.s32 %s27, 1
      %s68 = sadd.s32 %s34, 1
      %s69 = ssub.s32 %s26, %s38
      %s70 = ssub.s32 %s67, %s68
      %s71 = sor.u32 %s69, %s70
      %p72 = scmp.eq.s32.totalorder %s71, 0
      %s74 = sadd.s32 %s73, 1
      %s75 = scalar_select %p72, %s73, %s74
      %p78 = pneg %p72
      %p79 = scmp.eq.s32.totalorder %s19, 1
      %p80 = por %p78, %p79
      %p81 = scmp.ne.s32.totalorder %s73, %s76
      %p82 = scmp.eq.s32.totalorder %s19, 0
      %p83 = por %p81, %p82
      %p84 = scmp.ne.s32.totalorder %s73, %s76
      %p85 = scmp.eq.s32.totalorder %s24, 1
      %p86 = por %p84, %p85
      %p87 = scmp.ne.s32.totalorder %s76, %s77
      %p88 = scmp.eq.s32.totalorder %s24, 0
      %p89 = por %p87, %p88
      %p90 = scmp.ne.s32.totalorder %s76, %s77
      %p91 = scmp.eq.s32.totalorder %s25, 1
      %p92 = por %p90, %p91
      %p94 = scmp.ne.s32.totalorder %s77, %s93
      %p95 = scmp.eq.s32.totalorder %s25, 0
      %p96 = por %p94, %p95
      %s98 = sadd.s32 %s97, 1
      %p101 = scmp.eq.s32.totalorder %s19, 1
      %p102 = scmp.ne.s32.totalorder %s97, %s99
      %p103 = scmp.eq.s32.totalorder %s19, 0
      %p104 = por %p102, %p103
      %p105 = scmp.ne.s32.totalorder %s97, %s99
      %p106 = scmp.eq.s32.totalorder %s24, 1
      %p107 = por %p105, %p106
      %p108 = scmp.ne.s32.totalorder %s99, %s100
      %p109 = scmp.eq.s32.totalorder %s24, 0
      %p110 = por %p108, %p109
      %p111 = scmp.ne.s32.totalorder %s99, %s100
      %p112 = scmp.eq.s32.totalorder %s25, 1
      %p113 = por %p111, %p112
      %p115 = scmp.ne.s32.totalorder %s100, %s114
      %p116 = scmp.eq.s32.totalorder %s25, 0
      %p117 = por %p115, %p116
      %s119 = sadd.s32 %s118, 1
      %p122 = scmp.eq.s32.totalorder %s19, 1
      %p123 = scmp.ne.s32.totalorder %s118, %s120
      %p124 = scmp.eq.s32.totalorder %s19, 0
      %p125 = por %p123, %p124
      %p126 = scmp.ne.s32.totalorder %s118, %s120
      %p127 = scmp.eq.s32.totalorder %s24, 1
      %p128 = por %p126, %p127
      %p129 = scmp.ne.s32.totalorder %s120, %s121
      %p130 = scmp.eq.s32.totalorder %s24, 0
      %p131 = por %p129, %p130
      %p132 = scmp.ne.s32.totalorder %s120, %s121
      %p133 = scmp.eq.s32.totalorder %s25, 1
      %p134 = por %p132, %p133
      %p136 = scmp.ne.s32.totalorder %s121, %s135
      %p137 = scmp.eq.s32.totalorder %s25, 0
      %p138 = por %p136, %p137
      %s139 = ssub.s32 %s26, %s38
      %s140 = ssub.s32 %s27, %s34
      %s141 = sor.u32 %s139, %s140
      %p142 = scmp.eq.s32.totalorder %s141, 0
      %s144 = sadd.s32 %s143, 1
      %s145 = scalar_select %p142, %s143, %s144
      %p148 = pneg %p142
      %p149 = scmp.eq.s32.totalorder %s19, 1
      %p150 = por %p148, %p149
      %p151 = scmp.ne.s32.totalorder %s143, %s146
      %p152 = scmp.eq.s32.totalorder %s19, 0
      %p153 = por %p151, %p152
      %p154 = scmp.ne.s32.totalorder %s143, %s146
      %p155 = scmp.eq.s32.totalorder %s24, 1
      %p156 = por %p154, %p155
      %p157 = scmp.ne.s32.totalorder %s146, %s147
      %p158 = scmp.eq.s32.totalorder %s24, 0
      %p159 = por %p157, %p158
      %p160 = scmp.ne.s32.totalorder %s146, %s147
      %p161 = scmp.eq.s32.totalorder %s25, 1
      %p162 = por %p160, %p161
      %p164 = scmp.ne.s32.totalorder %s147, %s163
      %p165 = scmp.eq.s32.totalorder %s25, 0
      %p166 = por %p164, %p165
      %s167 = ssub.s32 %s26, %s38
      %s168 = ssub.s32 %s27, %s34
      %s169 = sor.u32 %s167, %s168
      %p170 = scmp.eq.s32.totalorder %s169, 0
      %s172 = sadd.s32 %s171, 1
      %s173 = scalar_select %p170, %s171, %s172
      %p176 = pneg %p170
      %p177 = scmp.eq.s32.totalorder %s19, 1
      %p178 = por %p176, %p177
      %p179 = scmp.ne.s32.totalorder %s171, %s174
      %p180 = scmp.eq.s32.totalorder %s19, 0
      %p181 = por %p179, %p180
      %p182 = scmp.ne.s32.totalorder %s171, %s174
      %p183 = scmp.eq.s32.totalorder %s24, 1
      %p184 = por %p182, %p183
      %p185 = scmp.ne.s32.totalorder %s174, %s175
      %p186 = scmp.eq.s32.totalorder %s24, 0
      %p187 = por %p185, %p186
      %p188 = scmp.ne.s32.totalorder %s174, %s175
      %p189 = scmp.eq.s32.totalorder %s25, 1
      %p190 = por %p188, %p189
      %p192 = scmp.ne.s32.totalorder %s175, %s191
      %p193 = scmp.eq.s32.totalorder %s25, 0
      %p194 = por %p192, %p193
      %s195 = ssub.s32 %s26, %s38
      %p196 = scmp.eq.s32.totalorder %s195, 0
      %s198 = sadd.s32 %s197, 1
      %s199 = scalar_select %p196, %s197, %s198
      %p202 = pneg %p196
      %p203 = scmp.eq.s32.totalorder %s19, 1
      %p204 = por %p202, %p203
      %p205 = scmp.ne.s32.totalorder %s197, %s200
      %p206 = scmp.eq.s32.totalorder %s19, 0
      %p207 = por %p205, %p206
      %p208 = scmp.ne.s32.totalorder %s197, %s200
      %p209 = scmp.eq.s32.totalorder %s24, 1
      %p210 = por %p208, %p209
      %p211 = scmp.ne.s32.totalorder %s200, %s201
      %p212 = scmp.eq.s32.totalorder %s24, 0
      %p213 = por %p211, %p212
      %p214 = scmp.ne.s32.totalorder %s200, %s201
      %p215 = scmp.eq.s32.totalorder %s25, 1
      %p216 = por %p214, %p215
      %p218 = scmp.ne.s32.totalorder %s201, %s217
      %p219 = scmp.eq.s32.totalorder %s25, 0
      %p220 = por %p218, %p219
      %p221 = scmp.le.s32.totalorder 1, %s19
      %p222 = scmp.lt.s32.totalorder %s19, 3
      %p223 = pnand %p221, %p222
      %p224 = pneg %p223
      // Predicated region
      $region9: #{tpu_custom_call.1} parent=5 // pred_check
        _
      $region10: #{tpu_custom_call.1} parent=5 // pred_check_branch
        %226 = sbr.rel (%p223) target = $region12
      $region11: #{tpu_custom_call.1} parent=5 // pred_region
        %s227 = ssub.s32 %s19, 1
        // Predicated region
        $region13: #{tpu_custom_call.1} parent=11 // pred_check
          %p228 = pneg %p110
        $region14: #{tpu_custom_call.1} parent=11 // pred_check_branch
          %230 = sbr.rel (%p228) target = $region16
        $region15: #{tpu_custom_call.1} parent=11 // pred_region
          _
        $region16: #{tpu_custom_call.1} parent=11 // pred_fallthru
          _
        // Predicated region
        $region17: #{tpu_custom_call.1} parent=11 // pred_check
          %p231 = pneg %p131
        $region18: #{tpu_custom_call.1} parent=11 // pred_check_branch
          %233 = sbr.rel (%p231) target = $region20
        $region19: #{tpu_custom_call.1} parent=11 // pred_region
          _
        $region20: #{tpu_custom_call.1} parent=11 // pred_fallthru
          _
      $region12: #{tpu_custom_call.1} parent=5 // pred_fallthru
        _
      %p234 = scmp.lt.s32.totalorder %s19, 2
      // Predicated region
      $region21: #{tpu_custom_call.1} parent=5 // pred_check
        %p235 = pneg %p234
      $region22: #{tpu_custom_call.1} parent=5 // pred_check_branch
        %237 = sbr.rel (%p235) target = $region24
      $region23: #{tpu_custom_call.1} parent=5 // pred_region
        // Predicated region
        $region25: #{tpu_custom_call.1} parent=23 // pred_check
          %p238 = pneg %p53
        $region26: #{tpu_custom_call.1} parent=23 // pred_check_branch
          %240 = sbr.rel (%p238) target = $region28
        $region27: #{tpu_custom_call.1} parent=23 // pred_region
          %s241 = smul.u32 3, %s27
          %p242 = scmp.lt.s32.totalorder %s26, 1
          %s243 = scalar_select %p242, %s26, 1
          %p244 = scmp.lt.s32.totalorder %s241, 5
          %s245 = scalar_select %p244, %s241, 5
          %s246 = smul.addr %s243, 6
          %s247 = sadd.s32 %s245, %s246
          %s248 = smul.addr %s247, 2
          %s249 = scalar_lea.vmem %s0, %s248
          %s250 = smul.u32 3, %s27
        $region28: #{tpu_custom_call.1} parent=23 // pred_fallthru
          _
        // Predicated region
        $region29: #{tpu_custom_call.1} parent=23 // pred_check
          %p251 = pneg %p83
        $region30: #{tpu_custom_call.1} parent=23 // pred_check_branch
          %253 = sbr.rel (%p251) target = $region32
        $region31: #{tpu_custom_call.1} parent=23 // pred_region
          %s254 = sadd.s32 %s27, 1
          %s255 = smul.u32 3, %s254
          %p256 = scmp.lt.s32.totalorder %s26, 1
          %s257 = scalar_select %p256, %s26, 1
          %p258 = scmp.lt.s32.totalorder %s255, 5
          %s259 = scalar_select %p258, %s255, 5
          %s260 = smul.addr %s257, 6
          %s261 = sadd.s32 %s259, %s260
          %s262 = smul.addr %s261, 2
          %s263 = scalar_lea.vmem %s1, %s262
          %s264 = sadd.s32 %s27, 1
          %s265 = smul.u32 3, %s264
        $region32: #{tpu_custom_call.1} parent=23 // pred_fallthru
          _
        // Predicated region
        $region33: #{tpu_custom_call.1} parent=23 // pred_check
          %p266 = pneg %p153
        $region34: #{tpu_custom_call.1} parent=23 // pred_check_branch
          %268 = sbr.rel (%p266) target = $region36
        $region35: #{tpu_custom_call.1} parent=23 // pred_region
          %s269 = smul.u32 3, %s27
          %p270 = scmp.lt.s32.totalorder %s26, 1
          %s271 = scalar_select %p270, %s26, 1
          %p272 = scmp.lt.s32.totalorder %s269, 2
          %s273 = scalar_select %p272, %s269, 2
          %s274 = smul.addr %s271, 3
          %s275 = sadd.s32 %s273, %s274
          %s276 = scalar_lea.vmem %s4, %s275
          %s277 = smul.u32 3, %s27
        $region36: #{tpu_custom_call.1} parent=23 // pred_fallthru
          _
      $region24: #{tpu_custom_call.1} parent=5 // pred_fallthru
        _
      %p278 = scmp.le.s32.totalorder 1, %s19
      %p279 = scmp.lt.s32.totalorder %s19, 3
      %p280 = pnand %p278, %p279
      %p281 = pneg %p280
      // Predicated region
      $region37: #{tpu_custom_call.1} parent=5 // pred_check
        _
      $region38: #{tpu_custom_call.1} parent=5 // pred_check_branch
        %283 = sbr.rel (%p280) target = $region40
      $region39: #{tpu_custom_call.1} parent=5 // pred_region
        %s284 = ssub.s32 %s19, 1
        %s285 = smul.u32 3, %s29
        %p286 = scmp.lt.s32.totalorder %s28, 1
        %s287 = scalar_select %p286, %s28, 1
        %p288 = scmp.lt.s32.totalorder %s285, 5
        %s289 = scalar_select %p288, %s285, 5
        %s290 = smul.addr %s287, 6
        %s291 = sadd.s32 %s289, %s290
        %s292 = smul.addr %s291, 2
        %s293 = scalar_lea.vmem %s0, %s292
        %p294 = pneg %p59
        %p295 = pneg %p56
        %s296 = sadd.s32 %s29, 1
        %s297 = smul.u32 3, %s296
        %p298 = scmp.lt.s32.totalorder %s28, 1
        %s299 = scalar_select %p298, %s28, 1
        %p300 = scmp.lt.s32.totalorder %s297, 5
        %s301 = scalar_select %p300, %s297, 5
        %s302 = smul.addr %s299, 6
        %s303 = sadd.s32 %s301, %s302
        %s304 = smul.addr %s303, 2
        %s305 = scalar_lea.vmem %s1, %s304
        %p306 = pneg %p89
        %p307 = pneg %p86
        %p308 = pneg %p110
        %p309 = pneg %p107
        %p310 = pneg %p131
        %p311 = pneg %p128
        %s312 = smul.u32 3, %s29
        %p313 = scmp.lt.s32.totalorder %s28, 1
        %s314 = scalar_select %p313, %s28, 1
        %p315 = scmp.lt.s32.totalorder %s312, 2
        %s316 = scalar_select %p315, %s312, 2
        %s317 = smul.addr %s314, 3
        %s318 = sadd.s32 %s316, %s317
        %s319 = scalar_lea.vmem %s4, %s318
        %p320 = pneg %p159
        %p321 = pneg %p156
        %p322 = pneg %p187
        %p323 = pneg %p184
        %s324 = sand.u32 %s174, 1
        %s325 = scalar_lea.sflag [#allocation3], %s324
        %s326 = sand.u32 %s174, 1
        %s327 = smul.addr %s326, 24
        %s328 = scalar_lea.vmem [#allocation2], %s327
        %p329 = pneg %p213
        %p330 = pneg %p210
        %s331 = sand.u32 %s200, 1
        %s332 = scalar_lea.sflag [#allocation5], %s331
        %s333 = sand.u32 %s200, 1
        %s334 = smul.addr %s333, 16
        %s335 = scalar_lea.vmem [#allocation4], %s334
        %s336 = smul.u32 3, %s29
        %p337 = scmp.lt.s32.totalorder %s28, 1
        %s338 = scalar_select %p337, %s28, 1
        %p339 = scmp.lt.s32.totalorder %s336, 5
        %s340 = scalar_select %p339, %s336, 5
        %s341 = smul.addr %s338, 6
        %s342 = sadd.s32 %s340, %s341
        %s343 = smul.addr %s342, 2
        %s344 = scalar_lea.vmem %s0, %s343
        %s345 = smul.u32 3, %s29
        %s346 = sadd.s32 %s29, 1
        %s347 = smul.u32 3, %s346
        %p348 = scmp.lt.s32.totalorder %s28, 1
        %s349 = scalar_select %p348, %s28, 1
        %p350 = scmp.lt.s32.totalorder %s347, 5
        %s351 = scalar_select %p350, %s347, 5
        %s352 = smul.addr %s349, 6
        %s353 = sadd.s32 %s351, %s352
        %s354 = smul.addr %s353, 2
        %s355 = scalar_lea.vmem %s1, %s354
        %s356 = sadd.s32 %s29, 1
        %s357 = smul.u32 3, %s356
        %s358 = smul.u32 3, %s29
        %p359 = scmp.lt.s32.totalorder %s28, 1
        %s360 = scalar_select %p359, %s28, 1
        %p361 = scmp.lt.s32.totalorder %s358, 2
        %s362 = scalar_select %p361, %s358, 2
        %s363 = smul.addr %s360, 3
        %s364 = sadd.s32 %s362, %s363
        %s365 = scalar_lea.vmem %s4, %s364
        %s366 = smul.u32 3, %s29
        %s367 = smul.u32 3, %s29
        %p369 = scmp.eq.s32.totalorder %s29, 0
        // Predicated region
        $region41: #{tpu_custom_call.1} parent=39 // pred_check
          %p370 = pneg %p369
        $region42: #{tpu_custom_call.1} parent=39 // pred_check_branch
          %372 = sbr.rel (%p370) target = $region44
        $region43: #{tpu_custom_call.1} parent=39 // pred_region
          %vm373 = vcmask 130048
          %374 = vst.msk [vmem:[%s335] sm:$0xff] %vm373, 0.0
          %375 = vst.msk [vmem:[%s335 + $0x8] sm:$0xff] %vm373, 0.0
        $region44: #{tpu_custom_call.1} parent=39 // pred_fallthru
          _
        %v376 = vld [vmem:[%s344] sm:$0x3f]
        %v377 = vld [vmem:[%s355] sm:$0x3f]
        %v379 = vcombine.high %v376, %v376
        %v381 = vunpack.c.l.s4 1983009808
        %v382 = vunpack.c.0.s8 %v381
        %v383 = vlaneseq
        %v384 = vshrl.u32 %v383, 7
        %v385 = vsub.s32 %v382, %v384
        %v386 = vrot.slane %v376, %v385
        %v388 = vunpack.c.l.s4 1983009808
        %v389 = vunpack.c.0.s8 %v388
        %v390 = vlaneseq
        %v391 = vshrl.u32 %v390, 7
        %v392 = vsub.s32 %v389, %v391
        %v393 = vrot.slane %v379, %v392
        %v394 = vcombine.high %v386, %v386
        %v397 = vunpack.c.l.s4 1983009808
        %v398 = vunpack.c.0.s8 %v397
        %v399 = vlaneseq
        %v400 = vshrl.u32 %v399, 7
        %v401 = vsub.s32 %v398, %v400
        %v402 = vrot.slane %v377, %v401
        %v403 = vld [vmem:[%s2] sm:$0xf]
        %v404 = vld [vmem:[%s2 + $0x4] sm:$0xf]
        %s405 = scalar_lea.vmem %s2, 8
        %v406 = vld [vmem:[%s405] sm:$0xf]
        %v407 = vld [vmem:[%s405 + $0x4] sm:$0xf]
        %v410 = vunpack.c.l.b16 %v406
        %v411 = vunpack.c.l.b16 %v407
        %v412 = vpack.c.b16 %v411, %v410
        %413 = vrot.lane.b32.xlu0 %v386, 127
        %v414 = vpop.permute.xlu0 %413
        %415 = vrot.lane.b32.xlu0 %v394, 127
        %v416 = vpop.permute.xlu0 %415
        %417 = vrot.lane.b32.xlu0 %v393, 127
        %v418 = vpop.permute.xlu0 %417
        %419 = vrot.lane.b32.xlu0 %v402, 127
        %v420 = vpop.permute.xlu0 %419
        %vm421 = vcmask 1039360
        %v422 = vsel %vm421, %v414, %v416
        %v423 = vsel %vm421, %v416, %v418
        %v424 = vsel %vm421, %v418, %v420
        %vm425 = vcmask 31744
        %v427 = vsel %vm425, %v412, 0
        %vm429 = vcmask 1041408
        %v431 = vsel %vm429, %v422, 0
        %v434 = vsel %vm429, %v423, 0
        %v437 = vsel %vm429, %v424, 0
        %439 = vmatprep.subr.bf16.mxu0 0
        %440 = vmatpush1.bf16.msra.mxu0 0
        %441 = vmatprep.subr.bf16.mxu0 0
        %442 = vmatpush1.bf16.msra.mxu0 0
        %443 = vmatprep.subr.bf16.mxu0 0
        %444 = vmatpush1.bf16.msra.mxu0 0
        %445 = vmatprep.subr.bf16.mxu0 0
        %446 = vmatpush1.bf16.msra.mxu0 0
        %447 = vmatprep.subr.bf16.mxu0 0
        %448 = vmatpush1.bf16.msra.mxu0 0
        %449 = vmatprep.subr.bf16.mxu0 0
        %450 = vmatpush1.bf16.msra.mxu0 0
        %451 = vmatprep.subr.bf16.mxu0 0
        %452 = vmatpush1.bf16.msra.mxu0 0
        %453 = vmatprep.subr.bf16.mxu0 %v434
        %454 = vmatpush1.bf16.msra.mxu0 %v431
        %455 = vmatprep.subr.bf16.mxu0 0
        %456 = vmatpush2.bf16.msra.mxu0 0
        %457 = vmatprep.subr.bf16.mxu0 0
        %458 = vmatpush2.bf16.msra.mxu0 0
        %459 = vmatprep.subr.bf16.mxu0 0
        %460 = vmatpush2.bf16.msra.mxu0 0
        %461 = vmatprep.subr.bf16.mxu0 0
        %462 = vmatpush2.bf16.msra.mxu0 0
        %463 = vmatprep.subr.bf16.mxu0 0
        %464 = vmatpush2.bf16.msra.mxu0 0
        %465 = vmatprep.subr.bf16.mxu0 0
        %466 = vmatpush2.bf16.msra.mxu0 0
        %467 = vmatprep.subr.bf16.mxu0 0
        %468 = vmatpush2.bf16.msra.mxu0 0
        %469 = vmatprep.subr.bf16.mxu0 0
        %470 = vmatpush2.bf16.msra.mxu0 0
        %471 = vmatprep.mubr.bf16.mxu0 0
        %472 = vmatmul.mubr.bf16.gmra.mxu0 %v427
        %v473 = vpop.f32.mrf.mxu0
        %v474 = vadd.f32 0.0, %v473
        %v475 = vpop.f32.mrf.mxu0
        %v476 = vadd.f32 0.0, %v475
        %v477 = vpop.f32.mrf.mxu0
        %v478 = vadd.f32 0.0, %v477
        %v479 = vpop.f32.mrf.mxu0
        %v480 = vadd.f32 0.0, %v479
        %481 = vdwg.mxu0
        %482 = vmatprep.subr.bf16.mxu0 0
        %483 = vmatpush1.bf16.msra.mxu0 0
        %484 = vmatprep.subr.bf16.mxu0 0
        %485 = vmatpush1.bf16.msra.mxu0 0
        %486 = vmatprep.subr.bf16.mxu0 0
        %487 = vmatpush1.bf16.msra.mxu0 0
        %488 = vmatprep.subr.bf16.mxu0 0
        %489 = vmatpush1.bf16.msra.mxu0 0
        %490 = vmatprep.subr.bf16.mxu0 0
        %491 = vmatpush1.bf16.msra.mxu0 0
        %492 = vmatprep.subr.bf16.mxu0 0
        %493 = vmatpush1.bf16.msra.mxu0 0
        %494 = vmatprep.subr.bf16.mxu0 0
        %495 = vmatpush1.bf16.msra.mxu0 0
        %496 = vmatprep.subr.bf16.mxu0 0
        %497 = vmatpush1.bf16.msra.mxu0 %v437
        %498 = vmatprep.subr.bf16.mxu0 0
        %499 = vmatpush2.bf16.msra.mxu0 0
        %500 = vmatprep.subr.bf16.mxu0 0
        %501 = vmatpush2.bf16.msra.mxu0 0
        %502 = vmatprep.subr.bf16.mxu0 0
        %503 = vmatpush2.bf16.msra.mxu0 0
        %504 = vmatprep.subr.bf16.mxu0 0
        %505 = vmatpush2.bf16.msra.mxu0 0
        %506 = vmatprep.subr.bf16.mxu0 0
        %507 = vmatpush2.bf16.msra.mxu0 0
        %508 = vmatprep.subr.bf16.mxu0 0
        %509 = vmatpush2.bf16.msra.mxu0 0
        %510 = vmatprep.subr.bf16.mxu0 0
        %511 = vmatpush2.bf16.msra.mxu0 0
        %512 = vmatprep.subr.bf16.mxu0 0
        %513 = vmatpush2.bf16.msra.mxu0 0
        %514 = vmatprep.mubr.bf16.mxu0 0
        %515 = vmatmul.mubr.bf16.gmra.mxu0 %v427
        %v516 = vpop.f32.mrf.mxu0
        %v517 = vadd.f32 0.0, %v516
        %v518 = vpop.f32.mrf.mxu0
        %v519 = vpop.f32.mrf.mxu0
        %v520 = vadd.f32 0.0, %v519
        %v521 = vpop.f32.mrf.mxu0
        %522 = vdwg.mxu0
        %v525 = vunpack.c.l.b16 %v403
        %v526 = vunpack.c.l.b16 %v404
        %v527 = vpack.c.b16 %v526, %v525
        %v529 = vsel %vm425, %v527, 0
        %v532 = vsel %vm429, %v386, 0
        %v535 = vsel %vm429, %v394, 0
        %v538 = vsel %vm429, %v393, 0
        %540 = vmatprep.subr.bf16.mxu0 0
        %541 = vmatpush1.bf16.msra.mxu0 0
        %542 = vmatprep.subr.bf16.mxu0 0
        %543 = vmatpush1.bf16.msra.mxu0 0
        %544 = vmatprep.subr.bf16.mxu0 0
        %545 = vmatpush1.bf16.msra.mxu0 0
        %546 = vmatprep.subr.bf16.mxu0 0
        %547 = vmatpush1.bf16.msra.mxu0 0
        %548 = vmatprep.subr.bf16.mxu0 0
        %549 = vmatpush1.bf16.msra.mxu0 0
        %550 = vmatprep.subr.bf16.mxu0 0
        %551 = vmatpush1.bf16.msra.mxu0 0
        %552 = vmatprep.subr.bf16.mxu0 0
        %553 = vmatpush1.bf16.msra.mxu0 0
        %554 = vmatprep.subr.bf16.mxu0 %v535
        %555 = vmatpush1.bf16.msra.mxu0 %v532
        %556 = vmatprep.subr.bf16.mxu0 0
        %557 = vmatpush2.bf16.msra.mxu0 0
        %558 = vmatprep.subr.bf16.mxu0 0
        %559 = vmatpush2.bf16.msra.mxu0 0
        %560 = vmatprep.subr.bf16.mxu0 0
        %561 = vmatpush2.bf16.msra.mxu0 0
        %562 = vmatprep.subr.bf16.mxu0 0
        %563 = vmatpush2.bf16.msra.mxu0 0
        %564 = vmatprep.subr.bf16.mxu0 0
        %565 = vmatpush2.bf16.msra.mxu0 0
        %566 = vmatprep.subr.bf16.mxu0 0
        %567 = vmatpush2.bf16.msra.mxu0 0
        %568 = vmatprep.subr.bf16.mxu0 0
        %569 = vmatpush2.bf16.msra.mxu0 0
        %570 = vmatprep.subr.bf16.mxu0 0
        %571 = vmatpush2.bf16.msra.mxu0 0
        %572 = vmatprep.mubr.bf16.mxu0 0
        %573 = vmatmul.mubr.bf16.gmra.mxu0 %v529
        %v574 = vpop.f32.mrf.mxu0
        %v575 = vadd.f32 %v474, %v574
        %v576 = vpop.f32.mrf.mxu0
        %v577 = vadd.f32 %v476, %v576
        %v578 = vpop.f32.mrf.mxu0
        %v579 = vadd.f32 %v478, %v578
        %v580 = vpop.f32.mrf.mxu0
        %v581 = vadd.f32 %v480, %v580
        %582 = vdwg.mxu0
        %583 = vmatprep.subr.bf16.mxu0 0
        %584 = vmatpush1.bf16.msra.mxu0 0
        %585 = vmatprep.subr.bf16.mxu0 0
        %586 = vmatpush1.bf16.msra.mxu0 0
        %587 = vmatprep.subr.bf16.mxu0 0
        %588 = vmatpush1.bf16.msra.mxu0 0
        %589 = vmatprep.subr.bf16.mxu0 0
        %590 = vmatpush1.bf16.msra.mxu0 0
        %591 = vmatprep.subr.bf16.mxu0 0
        %592 = vmatpush1.bf16.msra.mxu0 0
        %593 = vmatprep.subr.bf16.mxu0 0
        %594 = vmatpush1.bf16.msra.mxu0 0
        %595 = vmatprep.subr.bf16.mxu0 0
        %596 = vmatpush1.bf16.msra.mxu0 0
        %597 = vmatprep.subr.bf16.mxu0 0
        %598 = vmatpush1.bf16.msra.mxu0 %v538
        %599 = vmatprep.subr.bf16.mxu0 0
        %600 = vmatpush2.bf16.msra.mxu0 0
        %601 = vmatprep.subr.bf16.mxu0 0
        %602 = vmatpush2.bf16.msra.mxu0 0
        %603 = vmatprep.subr.bf16.mxu0 0
        %604 = vmatpush2.bf16.msra.mxu0 0
        %605 = vmatprep.subr.bf16.mxu0 0
        %606 = vmatpush2.bf16.msra.mxu0 0
        %607 = vmatprep.subr.bf16.mxu0 0
        %608 = vmatpush2.bf16.msra.mxu0 0
        %609 = vmatprep.subr.bf16.mxu0 0
        %610 = vmatpush2.bf16.msra.mxu0 0
        %611 = vmatprep.subr.bf16.mxu0 0
        %612 = vmatpush2.bf16.msra.mxu0 0
        %613 = vmatprep.subr.bf16.mxu0 0
        %614 = vmatpush2.bf16.msra.mxu0 0
        %615 = vmatprep.mubr.bf16.mxu0 0
        %616 = vmatmul.mubr.bf16.gmra.mxu0 %v529
        %v617 = vpop.f32.mrf.mxu0
        %v618 = vadd.f32 %v517, %v617
        %v619 = vpop.f32.mrf.mxu0
        %v620 = vpop.f32.mrf.mxu0
        %v621 = vadd.f32 %v520, %v620
        %v622 = vpop.f32.mrf.mxu0
        %623 = vdwg.mxu0
        %s624 = scalar_lea.vmem %s2, 16
        %v625 = vld [vmem:[%s624] sm:$0xf]
        %v626 = vld [vmem:[%s624 + $0x4] sm:$0xf]
        %v629 = vunpack.c.l.b16 %v625
        %v630 = vunpack.c.l.b16 %v626
        %v631 = vpack.c.b16 %v630, %v629
        %632 = vrot.lane.b32.xlu0 %v386, 126
        %v633 = vpop.permute.xlu0 %632
        %634 = vrot.lane.b32.xlu0 %v394, 126
        %v635 = vpop.permute.xlu0 %634
        %636 = vrot.lane.b32.xlu0 %v393, 126
        %v637 = vpop.permute.xlu0 %636
        %638 = vrot.lane.b32.xlu0 %v402, 126
        %v639 = vpop.permute.xlu0 %638
        %vm640 = vcmask 1031168
        %v641 = vsel %vm640, %v633, %v635
        %v642 = vsel %vm640, %v635, %v637
        %v643 = vsel %vm640, %v637, %v639
        %v645 = vsel %vm425, %v631, 0
        %v648 = vsel %vm429, %v641, 0
        %v651 = vsel %vm429, %v642, 0
        %v654 = vsel %vm429, %v643, 0
        %656 = vmatprep.subr.bf16.mxu0 0
        %657 = vmatpush1.bf16.msra.mxu0 0
        %658 = vmatprep.subr.bf16.mxu0 0
        %659 = vmatpush1.bf16.msra.mxu0 0
        %660 = vmatprep.subr.bf16.mxu0 0
        %661 = vmatpush1.bf16.msra.mxu0 0
        %662 = vmatprep.subr.bf16.mxu0 0
        %663 = vmatpush1.bf16.msra.mxu0 0
        %664 = vmatprep.subr.bf16.mxu0 0
        %665 = vmatpush1.bf16.msra.mxu0 0
        %666 = vmatprep.subr.bf16.mxu0 0
        %667 = vmatpush1.bf16.msra.mxu0 0
        %668 = vmatprep.subr.bf16.mxu0 0
        %669 = vmatpush1.bf16.msra.mxu0 0
        %670 = vmatprep.subr.bf16.mxu0 %v651
        %671 = vmatpush1.bf16.msra.mxu0 %v648
        %672 = vmatprep.subr.bf16.mxu0 0
        %673 = vmatpush2.bf16.msra.mxu0 0
        %674 = vmatprep.subr.bf16.mxu0 0
        %675 = vmatpush2.bf16.msra.mxu0 0
        %676 = vmatprep.subr.bf16.mxu0 0
        %677 = vmatpush2.bf16.msra.mxu0 0
        %678 = vmatprep.subr.bf16.mxu0 0
        %679 = vmatpush2.bf16.msra.mxu0 0
        %680 = vmatprep.subr.bf16.mxu0 0
        %681 = vmatpush2.bf16.msra.mxu0 0
        %682 = vmatprep.subr.bf16.mxu0 0
        %683 = vmatpush2.bf16.msra.mxu0 0
        %684 = vmatprep.subr.bf16.mxu0 0
        %685 = vmatpush2.bf16.msra.mxu0 0
        %686 = vmatprep.subr.bf16.mxu0 0
        %687 = vmatpush2.bf16.msra.mxu0 0
        %688 = vmatprep.mubr.bf16.mxu0 0
        %689 = vmatmul.mubr.bf16.gmra.mxu0 %v645
        %v690 = vpop.f32.mrf.mxu0
        %v691 = vadd.f32 0.0, %v690
        %v692 = vpop.f32.mrf.mxu0
        %v693 = vadd.f32 0.0, %v692
        %v694 = vpop.f32.mrf.mxu0
        %v695 = vadd.f32 0.0, %v694
        %v696 = vpop.f32.mrf.mxu0
        %v697 = vadd.f32 0.0, %v696
        %698 = vdwg.mxu0
        %699 = vmatprep.subr.bf16.mxu0 0
        %700 = vmatpush1.bf16.msra.mxu0 0
        %701 = vmatprep.subr.bf16.mxu0 0
        %702 = vmatpush1.bf16.msra.mxu0 0
        %703 = vmatprep.subr.bf16.mxu0 0
        %704 = vmatpush1.bf16.msra.mxu0 0
        %705 = vmatprep.subr.bf16.mxu0 0
        %706 = vmatpush1.bf16.msra.mxu0 0
        %707 = vmatprep.subr.bf16.mxu0 0
        %708 = vmatpush1.bf16.msra.mxu0 0
        %709 = vmatprep.subr.bf16.mxu0 0
        %710 = vmatpush1.bf16.msra.mxu0 0
        %711 = vmatprep.subr.bf16.mxu0 0
        %712 = vmatpush1.bf16.msra.mxu0 0
        %713 = vmatprep.subr.bf16.mxu0 0
        %714 = vmatpush1.bf16.msra.mxu0 %v654
        %715 = vmatprep.subr.bf16.mxu0 0
        %716 = vmatpush2.bf16.msra.mxu0 0
        %717 = vmatprep.subr.bf16.mxu0 0
        %718 = vmatpush2.bf16.msra.mxu0 0
        %719 = vmatprep.subr.bf16.mxu0 0
        %720 = vmatpush2.bf16.msra.mxu0 0
        %721 = vmatprep.subr.bf16.mxu0 0
        %722 = vmatpush2.bf16.msra.mxu0 0
        %723 = vmatprep.subr.bf16.mxu0 0
        %724 = vmatpush2.bf16.msra.mxu0 0
        %725 = vmatprep.subr.bf16.mxu0 0
        %726 = vmatpush2.bf16.msra.mxu0 0
        %727 = vmatprep.subr.bf16.mxu0 0
        %728 = vmatpush2.bf16.msra.mxu0 0
        %729 = vmatprep.subr.bf16.mxu0 0
        %730 = vmatpush2.bf16.msra.mxu0 0
        %731 = vmatprep.mubr.bf16.mxu0 0
        %732 = vmatmul.mubr.bf16.gmra.mxu0 %v645
        %v733 = vpop.f32.mrf.mxu0
        %v734 = vadd.f32 0.0, %v733
        %v735 = vpop.f32.mrf.mxu0
        %v736 = vpop.f32.mrf.mxu0
        %v737 = vadd.f32 0.0, %v736
        %v738 = vpop.f32.mrf.mxu0
        %739 = vdwg.mxu0
        %v740 = vadd.f32 %v575, %v691
        %v741 = vadd.f32 %v577, %v693
        %v742 = vadd.f32 %v618, %v734
        %v743 = vadd.f32 %v579, %v695
        %v744 = vadd.f32 %v581, %v697
        %v745 = vadd.f32 %v621, %v737
        %s746 = scalar_lea.vmem %s2, 24
        %v747 = vld [vmem:[%s746] sm:$0xf]
        %v748 = vld [vmem:[%s746 + $0x4] sm:$0xf]
        %v751 = vunpack.c.l.b16 %v747
        %v752 = vunpack.c.l.b16 %v748
        %v753 = vpack.c.b16 %v752, %v751
        %754 = vrot.lane.b32.xlu0 %v386, 110
        %v755 = vpop.permute.xlu0 %754
        %756 = vrot.lane.b32.xlu0 %v394, 110
        %v757 = vpop.permute.xlu0 %756
        %758 = vrot.lane.b32.xlu0 %v393, 110
        %v759 = vpop.permute.xlu0 %758
        %760 = vrot.lane.b32.xlu0 %v402, 110
        %v761 = vpop.permute.xlu0 %760
        %vm762 = vcmask 900096
        %v763 = vsel %vm762, %v755, %v757
        %v764 = vsel %vm762, %v757, %v759
        %v765 = vsel %vm762, %v759, %v761
        %v767 = vsel %vm425, %v753, 0
        %v770 = vsel %vm429, %v763, 0
        %v773 = vsel %vm429, %v764, 0
        %v776 = vsel %vm429, %v765, 0
        %778 = vmatprep.subr.bf16.mxu0 0
        %779 = vmatpush1.bf16.msra.mxu0 0
        %780 = vmatprep.subr.bf16.mxu0 0
        %781 = vmatpush1.bf16.msra.mxu0 0
        %782 = vmatprep.subr.bf16.mxu0 0
        %783 = vmatpush1.bf16.msra.mxu0 0
        %784 = vmatprep.subr.bf16.mxu0 0
        %785 = vmatpush1.bf16.msra.mxu0 0
        %786 = vmatprep.subr.bf16.mxu0 0
        %787 = vmatpush1.bf16.msra.mxu0 0
        %788 = vmatprep.subr.bf16.mxu0 0
        %789 = vmatpush1.bf16.msra.mxu0 0
        %790 = vmatprep.subr.bf16.mxu0 0
        %791 = vmatpush1.bf16.msra.mxu0 0
        %792 = vmatprep.subr.bf16.mxu0 %v773
        %793 = vmatpush1.bf16.msra.mxu0 %v770
        %794 = vmatprep.subr.bf16.mxu0 0
        %795 = vmatpush2.bf16.msra.mxu0 0
        %796 = vmatprep.subr.bf16.mxu0 0
        %797 = vmatpush2.bf16.msra.mxu0 0
        %798 = vmatprep.subr.bf16.mxu0 0
        %799 = vmatpush2.bf16.msra.mxu0 0
        %800 = vmatprep.subr.bf16.mxu0 0
        %801 = vmatpush2.bf16.msra.mxu0 0
        %802 = vmatprep.subr.bf16.mxu0 0
        %803 = vmatpush2.bf16.msra.mxu0 0
        %804 = vmatprep.subr.bf16.mxu0 0
        %805 = vmatpush2.bf16.msra.mxu0 0
        %806 = vmatprep.subr.bf16.mxu0 0
        %807 = vmatpush2.bf16.msra.mxu0 0
        %808 = vmatprep.subr.bf16.mxu0 0
        %809 = vmatpush2.bf16.msra.mxu0 0
        %810 = vmatprep.mubr.bf16.mxu0 0
        %811 = vmatmul.mubr.bf16.gmra.mxu0 %v767
        %v812 = vpop.f32.mrf.mxu0
        %v813 = vadd.f32 0.0, %v812
        %v814 = vpop.f32.mrf.mxu0
        %v815 = vadd.f32 0.0, %v814
        %v816 = vpop.f32.mrf.mxu0
        %v817 = vadd.f32 0.0, %v816
        %v818 = vpop.f32.mrf.mxu0
        %v819 = vadd.f32 0.0, %v818
        %820 = vdwg.mxu0
        %821 = vmatprep.subr.bf16.mxu0 0
        %822 = vmatpush1.bf16.msra.mxu0 0
        %823 = vmatprep.subr.bf16.mxu0 0
        %824 = vmatpush1.bf16.msra.mxu0 0
        %825 = vmatprep.subr.bf16.mxu0 0
        %826 = vmatpush1.bf16.msra.mxu0 0
        %827 = vmatprep.subr.bf16.mxu0 0
        %828 = vmatpush1.bf16.msra.mxu0 0
        %829 = vmatprep.subr.bf16.mxu0 0
        %830 = vmatpush1.bf16.msra.mxu0 0
        %831 = vmatprep.subr.bf16.mxu0 0
        %832 = vmatpush1.bf16.msra.mxu0 0
        %833 = vmatprep.subr.bf16.mxu0 0
        %834 = vmatpush1.bf16.msra.mxu0 0
        %835 = vmatprep.subr.bf16.mxu0 0
        %836 = vmatpush1.bf16.msra.mxu0 %v776
        %837 = vmatprep.subr.bf16.mxu0 0
        %838 = vmatpush2.bf16.msra.mxu0 0
        %839 = vmatprep.subr.bf16.mxu0 0
        %840 = vmatpush2.bf16.msra.mxu0 0
        %841 = vmatprep.subr.bf16.mxu0 0
        %842 = vmatpush2.bf16.msra.mxu0 0
        %843 = vmatprep.subr.bf16.mxu0 0
        %844 = vmatpush2.bf16.msra.mxu0 0
        %845 = vmatprep.subr.bf16.mxu0 0
        %846 = vmatpush2.bf16.msra.mxu0 0
        %847 = vmatprep.subr.bf16.mxu0 0
        %848 = vmatpush2.bf16.msra.mxu0 0
        %849 = vmatprep.subr.bf16.mxu0 0
        %850 = vmatpush2.bf16.msra.mxu0 0
        %851 = vmatprep.subr.bf16.mxu0 0
        %852 = vmatpush2.bf16.msra.mxu0 0
        %853 = vmatprep.mubr.bf16.mxu0 0
        %854 = vmatmul.mubr.bf16.gmra.mxu0 %v767
        %v855 = vpop.f32.mrf.mxu0
        %v856 = vadd.f32 0.0, %v855
        %v857 = vpop.f32.mrf.mxu0
        %v858 = vpop.f32.mrf.mxu0
        %v859 = vadd.f32 0.0, %v858
        %v860 = vpop.f32.mrf.mxu0
        %861 = vdwg.mxu0
        %v862 = vadd.f32 %v740, %v813
        %v863 = vadd.f32 %v741, %v815
        %v864 = vadd.f32 %v742, %v856
        %v865 = vadd.f32 %v743, %v817
        %v866 = vadd.f32 %v744, %v819
        %v867 = vadd.f32 %v745, %v859
        %s868 = scalar_lea.vmem %s2, 32
        %v869 = vld [vmem:[%s868] sm:$0xf]
        %v870 = vld [vmem:[%s868 + $0x4] sm:$0xf]
        %v873 = vunpack.c.l.b16 %v869
        %v874 = vunpack.c.l.b16 %v870
        %v875 = vpack.c.b16 %v874, %v873
        %876 = vrot.lane.b32.xlu0 %v386, 109
        %v877 = vpop.permute.xlu0 %876
        %878 = vrot.lane.b32.xlu0 %v394, 109
        %v879 = vpop.permute.xlu0 %878
        %880 = vrot.lane.b32.xlu0 %v393, 109
        %v881 = vpop.permute.xlu0 %880
        %882 = vrot.lane.b32.xlu0 %v402, 109
        %v883 = vpop.permute.xlu0 %882
        %vm884 = vcmask 891904
        %v885 = vsel %vm884, %v877, %v879
        %v886 = vsel %vm884, %v879, %v881
        %v887 = vsel %vm884, %v881, %v883
        %v889 = vsel %vm425, %v875, 0
        %v892 = vsel %vm429, %v885, 0
        %v895 = vsel %vm429, %v886, 0
        %v898 = vsel %vm429, %v887, 0
        %900 = vmatprep.subr.bf16.mxu0 0
        %901 = vmatpush1.bf16.msra.mxu0 0
        %902 = vmatprep.subr.bf16.mxu0 0
        %903 = vmatpush1.bf16.msra.mxu0 0
        %904 = vmatprep.subr.bf16.mxu0 0
        %905 = vmatpush1.bf16.msra.mxu0 0
        %906 = vmatprep.subr.bf16.mxu0 0
        %907 = vmatpush1.bf16.msra.mxu0 0
        %908 = vmatprep.subr.bf16.mxu0 0
        %909 = vmatpush1.bf16.msra.mxu0 0
        %910 = vmatprep.subr.bf16.mxu0 0
        %911 = vmatpush1.bf16.msra.mxu0 0
        %912 = vmatprep.subr.bf16.mxu0 0
        %913 = vmatpush1.bf16.msra.mxu0 0
        %914 = vmatprep.subr.bf16.mxu0 %v895
        %915 = vmatpush1.bf16.msra.mxu0 %v892
        %916 = vmatprep.subr.bf16.mxu0 0
        %917 = vmatpush2.bf16.msra.mxu0 0
        %918 = vmatprep.subr.bf16.mxu0 0
        %919 = vmatpush2.bf16.msra.mxu0 0
        %920 = vmatprep.subr.bf16.mxu0 0
        %921 = vmatpush2.bf16.msra.mxu0 0
        %922 = vmatprep.subr.bf16.mxu0 0
        %923 = vmatpush2.bf16.msra.mxu0 0
        %924 = vmatprep.subr.bf16.mxu0 0
        %925 = vmatpush2.bf16.msra.mxu0 0
        %926 = vmatprep.subr.bf16.mxu0 0
        %927 = vmatpush2.bf16.msra.mxu0 0
        %928 = vmatprep.subr.bf16.mxu0 0
        %929 = vmatpush2.bf16.msra.mxu0 0
        %930 = vmatprep.subr.bf16.mxu0 0
        %931 = vmatpush2.bf16.msra.mxu0 0
        %932 = vmatprep.mubr.bf16.mxu0 0
        %933 = vmatmul.mubr.bf16.gmra.mxu0 %v889
        %v934 = vpop.f32.mrf.mxu0
        %v935 = vadd.f32 0.0, %v934
        %v936 = vpop.f32.mrf.mxu0
        %v937 = vadd.f32 0.0, %v936
        %v938 = vpop.f32.mrf.mxu0
        %v939 = vadd.f32 0.0, %v938
        %v940 = vpop.f32.mrf.mxu0
        %v941 = vadd.f32 0.0, %v940
        %942 = vdwg.mxu0
        %943 = vmatprep.subr.bf16.mxu0 0
        %944 = vmatpush1.bf16.msra.mxu0 0
        %945 = vmatprep.subr.bf16.mxu0 0
        %946 = vmatpush1.bf16.msra.mxu0 0
        %947 = vmatprep.subr.bf16.mxu0 0
        %948 = vmatpush1.bf16.msra.mxu0 0
        %949 = vmatprep.subr.bf16.mxu0 0
        %950 = vmatpush1.bf16.msra.mxu0 0
        %951 = vmatprep.subr.bf16.mxu0 0
        %952 = vmatpush1.bf16.msra.mxu0 0
        %953 = vmatprep.subr.bf16.mxu0 0
        %954 = vmatpush1.bf16.msra.mxu0 0
        %955 = vmatprep.subr.bf16.mxu0 0
        %956 = vmatpush1.bf16.msra.mxu0 0
        %957 = vmatprep.subr.bf16.mxu0 0
        %958 = vmatpush1.bf16.msra.mxu0 %v898
        %959 = vmatprep.subr.bf16.mxu0 0
        %960 = vmatpush2.bf16.msra.mxu0 0
        %961 = vmatprep.subr.bf16.mxu0 0
        %962 = vmatpush2.bf16.msra.mxu0 0
        %963 = vmatprep.subr.bf16.mxu0 0
        %964 = vmatpush2.bf16.msra.mxu0 0
        %965 = vmatprep.subr.bf16.mxu0 0
        %966 = vmatpush2.bf16.msra.mxu0 0
        %967 = vmatprep.subr.bf16.mxu0 0
        %968 = vmatpush2.bf16.msra.mxu0 0
        %969 = vmatprep.subr.bf16.mxu0 0
        %970 = vmatpush2.bf16.msra.mxu0 0
        %971 = vmatprep.subr.bf16.mxu0 0
        %972 = vmatpush2.bf16.msra.mxu0 0
        %973 = vmatprep.subr.bf16.mxu0 0
        %974 = vmatpush2.bf16.msra.mxu0 0
        %975 = vmatprep.mubr.bf16.mxu0 0
        %976 = vmatmul.mubr.bf16.gmra.mxu0 %v889
        %v977 = vpop.f32.mrf.mxu0
        %v978 = vadd.f32 0.0, %v977
        %v979 = vpop.f32.mrf.mxu0
        %v980 = vpop.f32.mrf.mxu0
        %v981 = vadd.f32 0.0, %v980
        %v982 = vpop.f32.mrf.mxu0
        %983 = vdwg.mxu0
        %v984 = vadd.f32 %v862, %v935
        %v985 = vadd.f32 %v863, %v937
        %v986 = vadd.f32 %v864, %v978
        %v987 = vadd.f32 %v865, %v939
        %v988 = vadd.f32 %v866, %v941
        %v989 = vadd.f32 %v867, %v981
        %s990 = scalar_lea.vmem %s2, 40
        %v991 = vld [vmem:[%s990] sm:$0xf]
        %v992 = vld [vmem:[%s990 + $0x4] sm:$0xf]
        %v995 = vunpack.c.l.b16 %v991
        %v996 = vunpack.c.l.b16 %v992
        %v997 = vpack.c.b16 %v996, %v995
        %998 = vrot.lane.b32.xlu0 %v386, 108
        %v999 = vpop.permute.xlu0 %998
        %1000 = vrot.lane.b32.xlu0 %v394, 108
        %v1001 = vpop.permute.xlu0 %1000
        %1002 = vrot.lane.b32.xlu0 %v393, 108
        %v1003 = vpop.permute.xlu0 %1002
        %1004 = vrot.lane.b32.xlu0 %v402, 108
        %v1005 = vpop.permute.xlu0 %1004
        %vm1006 = vcmask 883712
        %v1007 = vsel %vm1006, %v999, %v1001
        %v1008 = vsel %vm1006, %v1001, %v1003
        %v1009 = vsel %vm1006, %v1003, %v1005
        %v1011 = vsel %vm425, %v997, 0
        %v1014 = vsel %vm429, %v1007, 0
        %v1017 = vsel %vm429, %v1008, 0
        %v1020 = vsel %vm429, %v1009, 0
        %1022 = vmatprep.subr.bf16.mxu0 0
        %1023 = vmatpush1.bf16.msra.mxu0 0
        %1024 = vmatprep.subr.bf16.mxu0 0
        %1025 = vmatpush1.bf16.msra.mxu0 0
        %1026 = vmatprep.subr.bf16.mxu0 0
        %1027 = vmatpush1.bf16.msra.mxu0 0
        %1028 = vmatprep.subr.bf16.mxu0 0
        %1029 = vmatpush1.bf16.msra.mxu0 0
        %1030 = vmatprep.subr.bf16.mxu0 0
        %1031 = vmatpush1.bf16.msra.mxu0 0
        %1032 = vmatprep.subr.bf16.mxu0 0
        %1033 = vmatpush1.bf16.msra.mxu0 0
        %1034 = vmatprep.subr.bf16.mxu0 0
        %1035 = vmatpush1.bf16.msra.mxu0 0
        %1036 = vmatprep.subr.bf16.mxu0 %v1017
        %1037 = vmatpush1.bf16.msra.mxu0 %v1014
        %1038 = vmatprep.subr.bf16.mxu0 0
        %1039 = vmatpush2.bf16.msra.mxu0 0
        %1040 = vmatprep.subr.bf16.mxu0 0
        %1041 = vmatpush2.bf16.msra.mxu0 0
        %1042 = vmatprep.subr.bf16.mxu0 0
        %1043 = vmatpush2.bf16.msra.mxu0 0
        %1044 = vmatprep.subr.bf16.mxu0 0
        %1045 = vmatpush2.bf16.msra.mxu0 0
        %1046 = vmatprep.subr.bf16.mxu0 0
        %1047 = vmatpush2.bf16.msra.mxu0 0
        %1048 = vmatprep.subr.bf16.mxu0 0
        %1049 = vmatpush2.bf16.msra.mxu0 0
        %1050 = vmatprep.subr.bf16.mxu0 0
        %1051 = vmatpush2.bf16.msra.mxu0 0
        %1052 = vmatprep.subr.bf16.mxu0 0
        %1053 = vmatpush2.bf16.msra.mxu0 0
        %1054 = vmatprep.mubr.bf16.mxu0 0
        %1055 = vmatmul.mubr.bf16.gmra.mxu0 %v1011
        %v1056 = vpop.f32.mrf.mxu0
        %v1057 = vadd.f32 0.0, %v1056
        %v1058 = vpop.f32.mrf.mxu0
        %v1059 = vadd.f32 0.0, %v1058
        %v1060 = vpop.f32.mrf.mxu0
        %v1061 = vadd.f32 0.0, %v1060
        %v1062 = vpop.f32.mrf.mxu0
        %v1063 = vadd.f32 0.0, %v1062
        %1064 = vdwg.mxu0
        %1065 = vmatprep.subr.bf16.mxu0 0
        %1066 = vmatpush1.bf16.msra.mxu0 0
        %1067 = vmatprep.subr.bf16.mxu0 0
        %1068 = vmatpush1.bf16.msra.mxu0 0
        %1069 = vmatprep.subr.bf16.mxu0 0
        %1070 = vmatpush1.bf16.msra.mxu0 0
        %1071 = vmatprep.subr.bf16.mxu0 0
        %1072 = vmatpush1.bf16.msra.mxu0 0
        %1073 = vmatprep.subr.bf16.mxu0 0
        %1074 = vmatpush1.bf16.msra.mxu0 0
        %1075 = vmatprep.subr.bf16.mxu0 0
        %1076 = vmatpush1.bf16.msra.mxu0 0
        %1077 = vmatprep.subr.bf16.mxu0 0
        %1078 = vmatpush1.bf16.msra.mxu0 0
        %1079 = vmatprep.subr.bf16.mxu0 0
        %1080 = vmatpush1.bf16.msra.mxu0 %v1020
        %1081 = vmatprep.subr.bf16.mxu0 0
        %1082 = vmatpush2.bf16.msra.mxu0 0
        %1083 = vmatprep.subr.bf16.mxu0 0
        %1084 = vmatpush2.bf16.msra.mxu0 0
        %1085 = vmatprep.subr.bf16.mxu0 0
        %1086 = vmatpush2.bf16.msra.mxu0 0
        %1087 = vmatprep.subr.bf16.mxu0 0
        %1088 = vmatpush2.bf16.msra.mxu0 0
        %1089 = vmatprep.subr.bf16.mxu0 0
        %1090 = vmatpush2.bf16.msra.mxu0 0
        %1091 = vmatprep.subr.bf16.mxu0 0
        %1092 = vmatpush2.bf16.msra.mxu0 0
        %1093 = vmatprep.subr.bf16.mxu0 0
        %1094 = vmatpush2.bf16.msra.mxu0 0
        %1095 = vmatprep.subr.bf16.mxu0 0
        %1096 = vmatpush2.bf16.msra.mxu0 0
        %1097 = vmatprep.mubr.bf16.mxu0 0
        %1098 = vmatmul.mubr.bf16.gmra.mxu0 %v1011
        %v1099 = vpop.f32.mrf.mxu0
        %v1100 = vadd.f32 0.0, %v1099
        %v1101 = vpop.f32.mrf.mxu0
        %v1102 = vpop.f32.mrf.mxu0
        %v1103 = vadd.f32 0.0, %v1102
        %v1104 = vpop.f32.mrf.mxu0
        %1105 = vdwg.mxu0
        %v1106 = vadd.f32 %v984, %v1057
        %v1107 = vadd.f32 %v985, %v1059
        %v1108 = vadd.f32 %v986, %v1100
        %v1109 = vadd.f32 %v987, %v1061
        %v1110 = vadd.f32 %v988, %v1063
        %v1111 = vadd.f32 %v989, %v1103
        %s1112 = scalar_lea.vmem %s2, 48
        %v1113 = vld [vmem:[%s1112] sm:$0xf]
        %v1114 = vld [vmem:[%s1112 + $0x4] sm:$0xf]
        %v1117 = vunpack.c.l.b16 %v1113
        %v1118 = vunpack.c.l.b16 %v1114
        %v1119 = vpack.c.b16 %v1118, %v1117
        %1120 = vrot.lane.b32.xlu0 %v386, 92
        %v1121 = vpop.permute.xlu0 %1120
        %1122 = vrot.lane.b32.xlu0 %v394, 92
        %v1123 = vpop.permute.xlu0 %1122
        %1124 = vrot.lane.b32.xlu0 %v393, 92
        %v1125 = vpop.permute.xlu0 %1124
        %1126 = vrot.lane.b32.xlu0 %v402, 92
        %v1127 = vpop.permute.xlu0 %1126
        %vm1128 = vcmask 752640
        %v1129 = vsel %vm1128, %v1121, %v1123
        %v1130 = vsel %vm1128, %v1123, %v1125
        %v1131 = vsel %vm1128, %v1125, %v1127
        %v1133 = vsel %vm425, %v1119, 0
        %v1136 = vsel %vm429, %v1129, 0
        %v1139 = vsel %vm429, %v1130, 0
        %v1142 = vsel %vm429, %v1131, 0
        %1144 = vmatprep.subr.bf16.mxu0 0
        %1145 = vmatpush1.bf16.msra.mxu0 0
        %1146 = vmatprep.subr.bf16.mxu0 0
        %1147 = vmatpush1.bf16.msra.mxu0 0
        %1148 = vmatprep.subr.bf16.mxu0 0
        %1149 = vmatpush1.bf16.msra.mxu0 0
        %1150 = vmatprep.subr.bf16.mxu0 0
        %1151 = vmatpush1.bf16.msra.mxu0 0
        %1152 = vmatprep.subr.bf16.mxu0 0
        %1153 = vmatpush1.bf16.msra.mxu0 0
        %1154 = vmatprep.subr.bf16.mxu0 0
        %1155 = vmatpush1.bf16.msra.mxu0 0
        %1156 = vmatprep.subr.bf16.mxu0 0
        %1157 = vmatpush1.bf16.msra.mxu0 0
        %1158 = vmatprep.subr.bf16.mxu0 %v1139
        %1159 = vmatpush1.bf16.msra.mxu0 %v1136
        %1160 = vmatprep.subr.bf16.mxu0 0
        %1161 = vmatpush2.bf16.msra.mxu0 0
        %1162 = vmatprep.subr.bf16.mxu0 0
        %1163 = vmatpush2.bf16.msra.mxu0 0
        %1164 = vmatprep.subr.bf16.mxu0 0
        %1165 = vmatpush2.bf16.msra.mxu0 0
        %1166 = vmatprep.subr.bf16.mxu0 0
        %1167 = vmatpush2.bf16.msra.mxu0 0
        %1168 = vmatprep.subr.bf16.mxu0 0
        %1169 = vmatpush2.bf16.msra.mxu0 0
        %1170 = vmatprep.subr.bf16.mxu0 0
        %1171 = vmatpush2.bf16.msra.mxu0 0
        %1172 = vmatprep.subr.bf16.mxu0 0
        %1173 = vmatpush2.bf16.msra.mxu0 0
        %1174 = vmatprep.subr.bf16.mxu0 0
        %1175 = vmatpush2.bf16.msra.mxu0 0
        %1176 = vmatprep.mubr.bf16.mxu0 0
        %1177 = vmatmul.mubr.bf16.gmra.mxu0 %v1133
        %v1178 = vpop.f32.mrf.mxu0
        %v1179 = vadd.f32 0.0, %v1178
        %v1180 = vpop.f32.mrf.mxu0
        %v1181 = vadd.f32 0.0, %v1180
        %v1182 = vpop.f32.mrf.mxu0
        %v1183 = vadd.f32 0.0, %v1182
        %v1184 = vpop.f32.mrf.mxu0
        %v1185 = vadd.f32 0.0, %v1184
        %1186 = vdwg.mxu0
        %1187 = vmatprep.subr.bf16.mxu0 0
        %1188 = vmatpush1.bf16.msra.mxu0 0
        %1189 = vmatprep.subr.bf16.mxu0 0
        %1190 = vmatpush1.bf16.msra.mxu0 0
        %1191 = vmatprep.subr.bf16.mxu0 0
        %1192 = vmatpush1.bf16.msra.mxu0 0
        %1193 = vmatprep.subr.bf16.mxu0 0
        %1194 = vmatpush1.bf16.msra.mxu0 0
        %1195 = vmatprep.subr.bf16.mxu0 0
        %1196 = vmatpush1.bf16.msra.mxu0 0
        %1197 = vmatprep.subr.bf16.mxu0 0
        %1198 = vmatpush1.bf16.msra.mxu0 0
        %1199 = vmatprep.subr.bf16.mxu0 0
        %1200 = vmatpush1.bf16.msra.mxu0 0
        %1201 = vmatprep.subr.bf16.mxu0 0
        %1202 = vmatpush1.bf16.msra.mxu0 %v1142
        %1203 = vmatprep.subr.bf16.mxu0 0
        %1204 = vmatpush2.bf16.msra.mxu0 0
        %1205 = vmatprep.subr.bf16.mxu0 0
        %1206 = vmatpush2.bf16.msra.mxu0 0
        %1207 = vmatprep.subr.bf16.mxu0 0
        %1208 = vmatpush2.bf16.msra.mxu0 0
        %1209 = vmatprep.subr.bf16.mxu0 0
        %1210 = vmatpush2.bf16.msra.mxu0 0
        %1211 = vmatprep.subr.bf16.mxu0 0
        %1212 = vmatpush2.bf16.msra.mxu0 0
        %1213 = vmatprep.subr.bf16.mxu0 0
        %1214 = vmatpush2.bf16.msra.mxu0 0
        %1215 = vmatprep.subr.bf16.mxu0 0
        %1216 = vmatpush2.bf16.msra.mxu0 0
        %1217 = vmatprep.subr.bf16.mxu0 0
        %1218 = vmatpush2.bf16.msra.mxu0 0
        %1219 = vmatprep.mubr.bf16.mxu0 0
        %1220 = vmatmul.mubr.bf16.gmra.mxu0 %v1133
        %v1221 = vpop.f32.mrf.mxu0
        %v1222 = vadd.f32 0.0, %v1221
        %v1223 = vpop.f32.mrf.mxu0
        %v1224 = vpop.f32.mrf.mxu0
        %v1225 = vadd.f32 0.0, %v1224
        %v1226 = vpop.f32.mrf.mxu0
        %1227 = vdwg.mxu0
        %v1228 = vadd.f32 %v1106, %v1179
        %v1229 = vadd.f32 %v1107, %v1181
        %v1230 = vadd.f32 %v1108, %v1222
        %v1231 = vadd.f32 %v1109, %v1183
        %v1232 = vadd.f32 %v1110, %v1185
        %v1233 = vadd.f32 %v1111, %v1225
        %s1234 = scalar_lea.vmem %s2, 56
        %v1235 = vld [vmem:[%s1234] sm:$0xf]
        %v1236 = vld [vmem:[%s1234 + $0x4] sm:$0xf]
        %v1239 = vunpack.c.l.b16 %v1235
        %v1240 = vunpack.c.l.b16 %v1236
        %v1241 = vpack.c.b16 %v1240, %v1239
        %1242 = vrot.lane.b32.xlu0 %v386, 91
        %v1243 = vpop.permute.xlu0 %1242
        %1244 = vrot.lane.b32.xlu0 %v394, 91
        %v1245 = vpop.permute.xlu0 %1244
        %1246 = vrot.lane.b32.xlu0 %v393, 91
        %v1247 = vpop.permute.xlu0 %1246
        %1248 = vrot.lane.b32.xlu0 %v402, 91
        %v1249 = vpop.permute.xlu0 %1248
        %vm1250 = vcmask 744448
        %v1251 = vsel %vm1250, %v1243, %v1245
        %v1252 = vsel %vm1250, %v1245, %v1247
        %v1253 = vsel %vm1250, %v1247, %v1249
        %v1255 = vsel %vm425, %v1241, 0
        %v1258 = vsel %vm429, %v1251, 0
        %v1261 = vsel %vm429, %v1252, 0
        %v1264 = vsel %vm429, %v1253, 0
        %1266 = vmatprep.subr.bf16.mxu0 0
        %1267 = vmatpush1.bf16.msra.mxu0 0
        %1268 = vmatprep.subr.bf16.mxu0 0
        %1269 = vmatpush1.bf16.msra.mxu0 0
        %1270 = vmatprep.subr.bf16.mxu0 0
        %1271 = vmatpush1.bf16.msra.mxu0 0
        %1272 = vmatprep.subr.bf16.mxu0 0
        %1273 = vmatpush1.bf16.msra.mxu0 0
        %1274 = vmatprep.subr.bf16.mxu0 0
        %1275 = vmatpush1.bf16.msra.mxu0 0
        %1276 = vmatprep.subr.bf16.mxu0 0
        %1277 = vmatpush1.bf16.msra.mxu0 0
        %1278 = vmatprep.subr.bf16.mxu0 0
        %1279 = vmatpush1.bf16.msra.mxu0 0
        %1280 = vmatprep.subr.bf16.mxu0 %v1261
        %1281 = vmatpush1.bf16.msra.mxu0 %v1258
        %1282 = vmatprep.subr.bf16.mxu0 0
        %1283 = vmatpush2.bf16.msra.mxu0 0
        %1284 = vmatprep.subr.bf16.mxu0 0
        %1285 = vmatpush2.bf16.msra.mxu0 0
        %1286 = vmatprep.subr.bf16.mxu0 0
        %1287 = vmatpush2.bf16.msra.mxu0 0
        %1288 = vmatprep.subr.bf16.mxu0 0
        %1289 = vmatpush2.bf16.msra.mxu0 0
        %1290 = vmatprep.subr.bf16.mxu0 0
        %1291 = vmatpush2.bf16.msra.mxu0 0
        %1292 = vmatprep.subr.bf16.mxu0 0
        %1293 = vmatpush2.bf16.msra.mxu0 0
        %1294 = vmatprep.subr.bf16.mxu0 0
        %1295 = vmatpush2.bf16.msra.mxu0 0
        %1296 = vmatprep.subr.bf16.mxu0 0
        %1297 = vmatpush2.bf16.msra.mxu0 0
        %1298 = vmatprep.mubr.bf16.mxu0 0
        %1299 = vmatmul.mubr.bf16.gmra.mxu0 %v1255
        %v1300 = vpop.f32.mrf.mxu0
        %v1301 = vadd.f32 0.0, %v1300
        %v1302 = vpop.f32.mrf.mxu0
        %v1303 = vadd.f32 0.0, %v1302
        %v1304 = vpop.f32.mrf.mxu0
        %v1305 = vadd.f32 0.0, %v1304
        %v1306 = vpop.f32.mrf.mxu0
        %v1307 = vadd.f32 0.0, %v1306
        %1308 = vdwg.mxu0
        %1309 = vmatprep.subr.bf16.mxu0 0
        %1310 = vmatpush1.bf16.msra.mxu0 0
        %1311 = vmatprep.subr.bf16.mxu0 0
        %1312 = vmatpush1.bf16.msra.mxu0 0
        %1313 = vmatprep.subr.bf16.mxu0 0
        %1314 = vmatpush1.bf16.msra.mxu0 0
        %1315 = vmatprep.subr.bf16.mxu0 0
        %1316 = vmatpush1.bf16.msra.mxu0 0
        %1317 = vmatprep.subr.bf16.mxu0 0
        %1318 = vmatpush1.bf16.msra.mxu0 0
        %1319 = vmatprep.subr.bf16.mxu0 0
        %1320 = vmatpush1.bf16.msra.mxu0 0
        %1321 = vmatprep.subr.bf16.mxu0 0
        %1322 = vmatpush1.bf16.msra.mxu0 0
        %1323 = vmatprep.subr.bf16.mxu0 0
        %1324 = vmatpush1.bf16.msra.mxu0 %v1264
        %1325 = vmatprep.subr.bf16.mxu0 0
        %1326 = vmatpush2.bf16.msra.mxu0 0
        %1327 = vmatprep.subr.bf16.mxu0 0
        %1328 = vmatpush2.bf16.msra.mxu0 0
        %1329 = vmatprep.subr.bf16.mxu0 0
        %1330 = vmatpush2.bf16.msra.mxu0 0
        %1331 = vmatprep.subr.bf16.mxu0 0
        %1332 = vmatpush2.bf16.msra.mxu0 0
        %1333 = vmatprep.subr.bf16.mxu0 0
        %1334 = vmatpush2.bf16.msra.mxu0 0
        %1335 = vmatprep.subr.bf16.mxu0 0
        %1336 = vmatpush2.bf16.msra.mxu0 0
        %1337 = vmatprep.subr.bf16.mxu0 0
        %1338 = vmatpush2.bf16.msra.mxu0 0
        %1339 = vmatprep.subr.bf16.mxu0 0
        %1340 = vmatpush2.bf16.msra.mxu0 0
        %1341 = vmatprep.mubr.bf16.mxu0 0
        %1342 = vmatmul.mubr.bf16.gmra.mxu0 %v1255
        %v1343 = vpop.f32.mrf.mxu0
        %v1344 = vadd.f32 0.0, %v1343
        %v1345 = vpop.f32.mrf.mxu0
        %v1346 = vpop.f32.mrf.mxu0
        %v1347 = vadd.f32 0.0, %v1346
        %v1348 = vpop.f32.mrf.mxu0
        %1349 = vdwg.mxu0
        %v1350 = vadd.f32 %v1228, %v1301
        %v1351 = vadd.f32 %v1229, %v1303
        %v1352 = vadd.f32 %v1230, %v1344
        %v1353 = vadd.f32 %v1231, %v1305
        %v1354 = vadd.f32 %v1232, %v1307
        %v1355 = vadd.f32 %v1233, %v1347
        %s1356 = scalar_lea.vmem %s2, 64
        %v1357 = vld [vmem:[%s1356] sm:$0xf]
        %v1358 = vld [vmem:[%s1356 + $0x4] sm:$0xf]
        %v1361 = vunpack.c.l.b16 %v1357
        %v1362 = vunpack.c.l.b16 %v1358
        %v1363 = vpack.c.b16 %v1362, %v1361
        %1364 = vrot.lane.b32.xlu0 %v386, 90
        %v1365 = vpop.permute.xlu0 %1364
        %1366 = vrot.lane.b32.xlu0 %v394, 90
        %v1367 = vpop.permute.xlu0 %1366
        %1368 = vrot.lane.b32.xlu0 %v393, 90
        %v1369 = vpop.permute.xlu0 %1368
        %1370 = vrot.lane.b32.xlu0 %v402, 90
        %v1371 = vpop.permute.xlu0 %1370
        %vm1372 = vcmask 736256
        %v1373 = vsel %vm1372, %v1365, %v1367
        %v1374 = vsel %vm1372, %v1367, %v1369
        %v1375 = vsel %vm1372, %v1369, %v1371
        %v1377 = vsel %vm425, %v1363, 0
        %v1380 = vsel %vm429, %v1373, 0
        %v1383 = vsel %vm429, %v1374, 0
        %v1386 = vsel %vm429, %v1375, 0
        %1388 = vmatprep.subr.bf16.mxu0 0
        %1389 = vmatpush1.bf16.msra.mxu0 0
        %1390 = vmatprep.subr.bf16.mxu0 0
        %1391 = vmatpush1.bf16.msra.mxu0 0
        %1392 = vmatprep.subr.bf16.mxu0 0
        %1393 = vmatpush1.bf16.msra.mxu0 0
        %1394 = vmatprep.subr.bf16.mxu0 0
        %1395 = vmatpush1.bf16.msra.mxu0 0
        %1396 = vmatprep.subr.bf16.mxu0 0
        %1397 = vmatpush1.bf16.msra.mxu0 0
        %1398 = vmatprep.subr.bf16.mxu0 0
        %1399 = vmatpush1.bf16.msra.mxu0 0
        %1400 = vmatprep.subr.bf16.mxu0 0
        %1401 = vmatpush1.bf16.msra.mxu0 0
        %1402 = vmatprep.subr.bf16.mxu0 %v1383
        %1403 = vmatpush1.bf16.msra.mxu0 %v1380
        %1404 = vmatprep.subr.bf16.mxu0 0
        %1405 = vmatpush2.bf16.msra.mxu0 0
        %1406 = vmatprep.subr.bf16.mxu0 0
        %1407 = vmatpush2.bf16.msra.mxu0 0
        %1408 = vmatprep.subr.bf16.mxu0 0
        %1409 = vmatpush2.bf16.msra.mxu0 0
        %1410 = vmatprep.subr.bf16.mxu0 0
        %1411 = vmatpush2.bf16.msra.mxu0 0
        %1412 = vmatprep.subr.bf16.mxu0 0
        %1413 = vmatpush2.bf16.msra.mxu0 0
        %1414 = vmatprep.subr.bf16.mxu0 0
        %1415 = vmatpush2.bf16.msra.mxu0 0
        %1416 = vmatprep.subr.bf16.mxu0 0
        %1417 = vmatpush2.bf16.msra.mxu0 0
        %1418 = vmatprep.subr.bf16.mxu0 0
        %1419 = vmatpush2.bf16.msra.mxu0 0
        %1420 = vmatprep.mubr.bf16.mxu0 0
        %1421 = vmatmul.mubr.bf16.gmra.mxu0 %v1377
        %v1422 = vpop.f32.mrf.mxu0
        %v1423 = vadd.f32 0.0, %v1422
        %v1424 = vpop.f32.mrf.mxu0
        %v1425 = vadd.f32 0.0, %v1424
        %v1426 = vpop.f32.mrf.mxu0
        %v1427 = vadd.f32 0.0, %v1426
        %v1428 = vpop.f32.mrf.mxu0
        %v1429 = vadd.f32 0.0, %v1428
        %1430 = vdwg.mxu0
        %1431 = vmatprep.subr.bf16.mxu0 0
        %1432 = vmatpush1.bf16.msra.mxu0 0
        %1433 = vmatprep.subr.bf16.mxu0 0
        %1434 = vmatpush1.bf16.msra.mxu0 0
        %1435 = vmatprep.subr.bf16.mxu0 0
        %1436 = vmatpush1.bf16.msra.mxu0 0
        %1437 = vmatprep.subr.bf16.mxu0 0
        %1438 = vmatpush1.bf16.msra.mxu0 0
        %1439 = vmatprep.subr.bf16.mxu0 0
        %1440 = vmatpush1.bf16.msra.mxu0 0
        %1441 = vmatprep.subr.bf16.mxu0 0
        %1442 = vmatpush1.bf16.msra.mxu0 0
        %1443 = vmatprep.subr.bf16.mxu0 0
        %1444 = vmatpush1.bf16.msra.mxu0 0
        %1445 = vmatprep.subr.bf16.mxu0 0
        %1446 = vmatpush1.bf16.msra.mxu0 %v1386
        %1447 = vmatprep.subr.bf16.mxu0 0
        %1448 = vmatpush2.bf16.msra.mxu0 0
        %1449 = vmatprep.subr.bf16.mxu0 0
        %1450 = vmatpush2.bf16.msra.mxu0 0
        %1451 = vmatprep.subr.bf16.mxu0 0
        %1452 = vmatpush2.bf16.msra.mxu0 0
        %1453 = vmatprep.subr.bf16.mxu0 0
        %1454 = vmatpush2.bf16.msra.mxu0 0
        %1455 = vmatprep.subr.bf16.mxu0 0
        %1456 = vmatpush2.bf16.msra.mxu0 0
        %1457 = vmatprep.subr.bf16.mxu0 0
        %1458 = vmatpush2.bf16.msra.mxu0 0
        %1459 = vmatprep.subr.bf16.mxu0 0
        %1460 = vmatpush2.bf16.msra.mxu0 0
        %1461 = vmatprep.subr.bf16.mxu0 0
        %1462 = vmatpush2.bf16.msra.mxu0 0
        %1463 = vmatprep.mubr.bf16.mxu0 0
        %1464 = vmatmul.mubr.bf16.gmra.mxu0 %v1377
        %v1465 = vpop.f32.mrf.mxu0
        %v1466 = vadd.f32 0.0, %v1465
        %v1467 = vpop.f32.mrf.mxu0
        %v1468 = vpop.f32.mrf.mxu0
        %v1469 = vadd.f32 0.0, %v1468
        %v1470 = vpop.f32.mrf.mxu0
        %1471 = vdwg.mxu0
        %v1472 = vadd.f32 %v1350, %v1423
        %v1473 = vadd.f32 %v1351, %v1425
        %v1474 = vadd.f32 %v1352, %v1466
        %v1475 = vadd.f32 %v1353, %v1427
        %v1476 = vadd.f32 %v1354, %v1429
        %v1477 = vadd.f32 %v1355, %v1469
        %v1478 = vld [vmem:[%s3] sm:$0xff]
        %v1479 = vld [vmem:[%s3 + $0x8] sm:$0xff]
        %1481 = vset.pattern.permute.xlu0 0
        %1482 = vperm.xlu0 %1481, %v1478
        %v1483 = vpop.permute.xlu0 %1482
        %1486 = vset.pattern.permute.xlu0 0
        %1487 = vperm.xlu0 %1486, %v1479
        %v1488 = vpop.permute.xlu0 %1487
        %v1490 = vadd.f32 %v1472, %v1483
        %v1491 = vadd.f32 %v1473, %v1483
        %v1492 = vadd.f32 %v1474, %v1483
        %v1493 = vadd.f32 %v1475, %v1488
        %v1494 = vadd.f32 %v1476, %v1488
        %v1495 = vadd.f32 %v1477, %v1488
        %v1496 = vpack.c.bf16 %v1493, %v1490
        %v1497 = vpack.c.bf16 %v1494, %v1491
        %v1498 = vpack.c.bf16 %v1495, %v1492
        %v1502 = vunpack.c.l.b16 %v1496
        %v1503 = vunpack.c.l.b16 %v1497
        %v1504 = vunpack.c.l.b16 %v1498
        %v1505 = vunpack.c.h.b16 %v1496
        %v1506 = vunpack.c.h.b16 %v1497
        %v1507 = vunpack.c.h.b16 %v1498
        %v1508 = vpack.c.b16 %v1503, %v1502
        %v1509 = vpack.c.b16 %v1504, %v1504
        %v1510 = vpack.c.b16 %v1506, %v1505
        %v1511 = vpack.c.b16 %v1507, %v1507
        %1516 = vst [vmem:[%s328] sm:$0xff] %v1508
        %1517 = vst [vmem:[%s328 + $0x8] sm:$0xf] %v1509
        %1518 = vst [vmem:[%s328 + $0xc] sm:$0xff] %v1510
        %1519 = vst [vmem:[%s328 + $0x14] sm:$0xf] %v1511
        %v1520 = vlaneseq
        %v1521 = vshrl.u32 %v1520, 7
        %v1522 = vadd.s32 %v1521, 8
        %v1523 = vld [vmem:[%s365] sm:$0x7]
        %v1524 = vlaneseq
        %v1525 = vshrl.u32 %v1524, 7
        %v1526 = vsub.s32 0, %v1525
        %v1527 = vrot.slane %v1523, %v1526
        %v1528 = vlaneseq
        %v1529 = vshrl.u32 %v1528, 7
        %v1530 = vsub.s32 1, %v1529
        %v1531 = vrot.slane %v1523, %v1530
        %v1532 = vlaneseq
        %v1533 = vshrl.u32 %v1532, 7
        %v1534 = vsub.s32 2, %v1533
        %v1535 = vrot.slane %v1523, %v1534
        %vm1536 = vcmp.eq.s32.totalorder %v1527, %v1521
        %vm1537 = vcmp.eq.s32.totalorder %v1531, %v1521
        %vm1538 = vcmp.eq.s32.totalorder %v1535, %v1521
        %vm1539 = vcmp.eq.s32.totalorder %v1527, %v1522
        %vm1540 = vcmp.eq.s32.totalorder %v1531, %v1522
        %vm1541 = vcmp.eq.s32.totalorder %v1535, %v1522
        %v1542 = vsel %vm1536, 1, 0
        %v1543 = vsel %vm1537, 1, 0
        %v1544 = vsel %vm1538, 1, 0
        %v1545 = vsel %vm1539, 1, 0
        %v1546 = vsel %vm1540, 1, 0
        %v1547 = vsel %vm1541, 1, 0
        %v1548 = vcvt.s32.f32 %v1542
        %v1549 = vcvt.s32.f32 %v1543
        %v1550 = vcvt.s32.f32 %v1544
        %v1551 = vcvt.s32.f32 %v1545
        %v1552 = vcvt.s32.f32 %v1546
        %v1553 = vcvt.s32.f32 %v1547
        %v1554 = vpack.c.bf16 %v1551, %v1548
        %v1555 = vpack.c.bf16 %v1552, %v1549
        %v1556 = vpack.c.bf16 %v1553, %v1550
        %v1557 = vld [vmem:[%s335] sm:$0xff]
        %v1558 = vld [vmem:[%s335 + $0x8] sm:$0xff]
        %1559 = vmatprep.subr.bf16.mxu0 0
        %1560 = vmatpush1.bf16.xpose.msra.mxu0 0
        %1561 = vmatprep.subr.bf16.mxu0 0
        %1562 = vmatpush1.bf16.xpose.msra.mxu0 0
        %1563 = vmatprep.subr.bf16.mxu0 0
        %1564 = vmatpush1.bf16.xpose.msra.mxu0 0
        %1565 = vmatprep.subr.bf16.mxu0 0
        %1566 = vmatpush1.bf16.xpose.msra.mxu0 0
        %1567 = vmatprep.subr.bf16.mxu0 0
        %1568 = vmatpush1.bf16.xpose.msra.mxu0 0
        %1569 = vmatprep.subr.bf16.mxu0 0
        %1570 = vmatpush1.bf16.xpose.msra.mxu0 0
        %1571 = vmatprep.subr.bf16.mxu0 0
        %1572 = vmatpush1.bf16.xpose.msra.mxu0 0
        %1573 = vmatprep.subr.bf16.mxu0 %v1555
        %1574 = vmatpush1.bf16.xpose.msra.mxu0 %v1554
        %1575 = vmatprep.subr.bf16.mxu0 0
        %1576 = vmatpush2.bf16.xpose.msra.mxu0 0
        %1577 = vmatprep.subr.bf16.mxu0 0
        %1578 = vmatpush2.bf16.xpose.msra.mxu0 0
        %1579 = vmatprep.subr.bf16.mxu0 0
        %1580 = vmatpush2.bf16.xpose.msra.mxu0 0
        %1581 = vmatprep.subr.bf16.mxu0 0
        %1582 = vmatpush2.bf16.xpose.msra.mxu0 0
        %1583 = vmatprep.subr.bf16.mxu0 0
        %1584 = vmatpush2.bf16.xpose.msra.mxu0 0
        %1585 = vmatprep.subr.bf16.mxu0 0
        %1586 = vmatpush2.bf16.xpose.msra.mxu0 0
        %1587 = vmatprep.subr.bf16.mxu0 0
        %1588 = vmatpush2.bf16.xpose.msra.mxu0 0
        %1589 = vmatprep.subr.bf16.mxu0 0
        %1590 = vmatpush2.bf16.xpose.msra.mxu0 0
        %1591 = vmatprep.mubr.bf16.mxu0 %v1497
        %1592 = vmatmul.mubr.bf16.gmra.mxu0 %v1496
        %v1593 = vpop.f32.mrf.mxu0
        %v1594 = vadd.f32 0.0, %v1593
        %v1595 = vpop.f32.mrf.mxu0
        %v1596 = vpop.f32.mrf.mxu0
        %v1597 = vadd.f32 0.0, %v1596
        %v1598 = vpop.f32.mrf.mxu0
        %1599 = vdwg.mxu0
        %1600 = vmatprep.subr.bf16.mxu0 0
        %1601 = vmatpush1.bf16.xpose.msra.mxu0 0
        %1602 = vmatprep.subr.bf16.mxu0 0
        %1603 = vmatpush1.bf16.xpose.msra.mxu0 0
        %1604 = vmatprep.subr.bf16.mxu0 0
        %1605 = vmatpush1.bf16.xpose.msra.mxu0 0
        %1606 = vmatprep.subr.bf16.mxu0 0
        %1607 = vmatpush1.bf16.xpose.msra.mxu0 0
        %1608 = vmatprep.subr.bf16.mxu0 0
        %1609 = vmatpush1.bf16.xpose.msra.mxu0 0
        %1610 = vmatprep.subr.bf16.mxu0 0
        %1611 = vmatpush1.bf16.xpose.msra.mxu0 0
        %1612 = vmatprep.subr.bf16.mxu0 0
        %1613 = vmatpush1.bf16.xpose.msra.mxu0 0
        %1614 = vmatprep.subr.bf16.mxu0 0
        %1615 = vmatpush1.bf16.xpose.msra.mxu0 %v1556
        %1616 = vmatprep.subr.bf16.mxu0 0
        %1617 = vmatpush2.bf16.xpose.msra.mxu0 0
        %1618 = vmatprep.subr.bf16.mxu0 0
        %1619 = vmatpush2.bf16.xpose.msra.mxu0 0
        %1620 = vmatprep.subr.bf16.mxu0 0
        %1621 = vmatpush2.bf16.xpose.msra.mxu0 0
        %1622 = vmatprep.subr.bf16.mxu0 0
        %1623 = vmatpush2.bf16.xpose.msra.mxu0 0
        %1624 = vmatprep.subr.bf16.mxu0 0
        %1625 = vmatpush2.bf16.xpose.msra.mxu0 0
        %1626 = vmatprep.subr.bf16.mxu0 0
        %1627 = vmatpush2.bf16.xpose.msra.mxu0 0
        %1628 = vmatprep.subr.bf16.mxu0 0
        %1629 = vmatpush2.bf16.xpose.msra.mxu0 0
        %1630 = vmatprep.subr.bf16.mxu0 0
        %1631 = vmatpush2.bf16.xpose.msra.mxu0 0
        %1632 = vmatprep.mubr.bf16.mxu0 0
        %1633 = vmatmul.mubr.bf16.gmra.mxu0 %v1498
        %v1634 = vpop.f32.mrf.mxu0
        %v1635 = vadd.f32 %v1594, %v1634
        %v1636 = vpop.f32.mrf.mxu0
        %v1637 = vpop.f32.mrf.mxu0
        %v1638 = vadd.f32 %v1597, %v1637
        %v1639 = vpop.f32.mrf.mxu0
        %1640 = vdwg.mxu0
        %v1641 = vadd.f32 %v1557, %v1635
        %v1642 = vadd.f32 %v1558, %v1638
        %vm1643 = vcmask 130048
        %1644 = vst.msk [vmem:[%s335] sm:$0xff] %vm1643, %v1641
        %1645 = vst.msk [vmem:[%s335 + $0x8] sm:$0xff] %vm1643, %v1642
        %s1646 = sand.u32 %s174, 1
        %s1647 = scalar_lea.sflag [#allocation3], %s1646
        %s1648 = sand.u32 %s174, 1
        %s1649 = smul.addr %s1648, 24
        %s1650 = scalar_lea.vmem [#allocation2], %s1649
        %s1651 = sand.u32 %s200, 1
        %s1652 = scalar_lea.sflag [#allocation5], %s1651
        %s1653 = sand.u32 %s200, 1
        %s1654 = smul.addr %s1653, 16
        %s1655 = scalar_lea.vmem [#allocation4], %s1654
        // Predicated region
        $region45: #{tpu_custom_call.1} parent=39 // pred_check
          %p1656 = pneg %p184
        $region46: #{tpu_custom_call.1} parent=39 // pred_check_branch
          %1658 = sbr.rel (%p1656) target = $region48
        $region47: #{tpu_custom_call.1} parent=39 // pred_region
          %s1659 = smul.u32 3, %s29
          %s1661 = ssub.s32 384, 384
          %1662 = vsyncadd %s1647, %s1661
          %s1663 = smul.addr %s28, 6
          %s1664 = sadd.s32 %s1659, %s1663
          %s1665 = smul.addr %s1664, 64
          %s1666 = scalar_lea.hbm %s5, %s1665
          %s1667 = sshll.u32 %s1650, 4
          %s1668 = int_to_ptr.vmem [resolvable:$true] %s1667
          %1673 = dma.vmem_to_hbm [thread:$0]  %s1668, 384, %s1666, %s1647, 192, 192, 12
        $region48: #{tpu_custom_call.1} parent=39 // pred_fallthru
          _
        // Predicated region
        $region49: #{tpu_custom_call.1} parent=39 // pred_check
          %p1674 = pneg %p210
        $region50: #{tpu_custom_call.1} parent=39 // pred_check_branch
          %1676 = sbr.rel (%p1674) target = $region52
        $region51: #{tpu_custom_call.1} parent=39 // pred_region
          %s1678 = ssub.s32 256, 256
          %1679 = vsyncadd %s1652, %s1678
          %s1680 = smul.addr %s28, 2
          %s1681 = smul.addr %s1680, 128
          %s1682 = scalar_lea.hbm %s6, %s1681
          %s1683 = sshll.u32 %s1655, 4
          %s1684 = int_to_ptr.vmem [resolvable:$true] %s1683
          %1689 = dma.vmem_to_hbm [thread:$0]  %s1684, 256, %s1682, %s1652, 128, 128, 8
        $region52: #{tpu_custom_call.1} parent=39 // pred_fallthru
          _
      $region40: #{tpu_custom_call.1} parent=5 // pred_fallthru
        _
      %p1690 = scmp.le.s32.totalorder 2, %s19
      // Predicated region
      $region53: #{tpu_custom_call.1} parent=5 // pred_check
        %p1691 = pneg %p1690
      $region54: #{tpu_custom_call.1} parent=5 // pred_check_branch
        %1693 = sbr.rel (%p1691) target = $region56
      $region55: #{tpu_custom_call.1} parent=5 // pred_region
        %s1694 = ssub.s32 %s19, 2
        // Predicated region
        $region57: #{tpu_custom_call.1} parent=55 // pred_check
          %p1695 = pneg %p190
        $region58: #{tpu_custom_call.1} parent=55 // pred_check_branch
          %1697 = sbr.rel (%p1695) target = $region60
        $region59: #{tpu_custom_call.1} parent=55 // pred_region
          %s1698 = sand.u32 %s175, 1
          %s1699 = scalar_lea.sflag [#allocation3], %s1698
          %s1700 = sand.u32 %s175, 1
          %s1701 = smul.addr %s1700, 24
          %s1702 = scalar_lea.vmem [#allocation2], %s1701
          %1703 = dma.done %s1699, 384
        $region60: #{tpu_custom_call.1} parent=55 // pred_fallthru
          _
        // Predicated region
        $region61: #{tpu_custom_call.1} parent=55 // pred_check
          %p1704 = pneg %p216
        $region62: #{tpu_custom_call.1} parent=55 // pred_check_branch
          %1706 = sbr.rel (%p1704) target = $region64
        $region63: #{tpu_custom_call.1} parent=55 // pred_region
          %s1707 = sand.u32 %s201, 1
          %s1708 = scalar_lea.sflag [#allocation5], %s1707
          %s1709 = sand.u32 %s201, 1
          %s1710 = smul.addr %s1709, 16
          %s1711 = scalar_lea.vmem [#allocation4], %s1710
          %1712 = dma.done %s1708, 256
        $region64: #{tpu_custom_call.1} parent=55 // pred_fallthru
          _
      $region56: #{tpu_custom_call.1} parent=5 // pred_fallthru
        _
    $region6: #{tpu_custom_call.1} parent=1 // loop_footer
      %s23 = sadd.s32 1, %s19
    $region7: #{tpu_custom_call.1} parent=1 // loop_footer_branch
      %18 = sbr.rel target = $region3
    $region8: #{tpu_custom_call.1} parent=1 // loop_exit
      _
    %1713 = vsyncpa [#allocation3], 1
    %s1714 = scalar_lea.sflag [#allocation3], 1
    %1715 = vsyncpa %s1714, 1
    %1716 = vsyncpa [#allocation5], 1
    %s1717 = scalar_lea.sflag [#allocation5], 1
    %1718 = vsyncpa %s1717, 1

</llo_original>
